<compile_context>
chip_gen: v7x
topology: tpu7x:2x2x1
jax: 0.10.0
libtpu: 0.0.40
codegen_flags: <defaults>
</compile_context>

<pallas_src>
import functools

import jax
import jax.numpy as jnp
from jax.experimental import pallas as pl
from jax.experimental.pallas import tpu as pltpu

IGNORE_INDEX = 37


def _round_up(x, m):
    return ((x + m - 1) // m) * m


def _default_num_splits():
    """2 splits only on chips with 2 TensorCores (v7x); 1 otherwise."""
    try:
        kind = jax.devices()[0].device_kind.lower()
    except Exception:
        return 1
    return 2 if "v7" in kind else 1


def _srn_ce_kernel(pvam_ref, gsrm_ref, vsfd_ref, tgt_ref, out_ref,
                   acc_p, acc_g, acc_v, acc_c, *,
                   ignore_index, n_rows, tile_rows, tiles_per_split,
                   last_block):
    """Accumulates per-head sums of row CE losses and the valid-row count.

    Grid: (splits, tiles_per_split).  Axis 0 is 'parallel' (megacore), axis 1
    is the sequential row-tile reduction.  acc_* are (1, 1) f32 VMEM scratch:
    [pvam_loss_sum, gsrm_loss_sum, vsfd_loss_sum, valid_count].
    """
    p = pl.program_id(0)          # core split
    i = pl.program_id(1)          # row tile within this split

    @pl.when(i == 0)
    def _():
        acc_p[...] = jnp.zeros_like(acc_p)
        acc_g[...] = jnp.zeros_like(acc_g)
        acc_v[...] = jnp.zeros_like(acc_v)
        acc_c[...] = jnp.zeros_like(acc_c)

    tm = tile_rows
    c = pvam_ref.shape[-1]
    block_idx = p * tiles_per_split + i

    # Skip all compute for a fully out-of-range clamped duplicate tail block.
    @pl.when(block_idx <= last_block)
    def _():
        tgt = tgt_ref[...]                                        # (TM, 1) i32

        # Global row index of every sublane row in this tile; rows >= n_rows
        # belong to the unpadded tail and must contribute nothing.
        rows = block_idx * tm + jax.lax.broadcasted_iota(jnp.int32, (tm, 1), 0)
        valid = jnp.logical_and(rows < n_rows, tgt != ignore_index)

        cls_iota = jax.lax.broadcasted_iota(jnp.int32, (tm, c), 1)
        onehot = cls_iota == tgt                                  # (TM, C)
        ones_c = jnp.ones((c, 1), jnp.float32)                    # MXU row-sum

        def head_sum(logits_ref):
            logits = logits_ref[...].astype(jnp.float32)          # (TM, C)
            # numerically-stable log-sum-exp over the class (lane) axis;
            # the lane sums go through the idle MXU (dot with ones column)
            # instead of the XLU.
            m = jnp.max(logits, axis=-1, keepdims=True)           # XLU
            sumexp = jnp.dot(jnp.exp(logits - m), ones_c,
                             preferred_element_type=jnp.float32)  # (TM, 1)
            lse = m + jnp.log(sumexp)
            # target-class logit via one-hot select + MXU row sum (no dynamic
            # gather on TPU).
            tgt_logit = jnp.dot(jnp.where(onehot, logits, 0.0), ones_c,
                                preferred_element_type=jnp.float32)
            # select (not multiply) so non-finite garbage in OOB tail rows is
            # dropped rather than turned into NaN * 0.
            row_loss = jnp.where(valid, lse - tgt_logit, 0.0)     # (TM, 1)
            return jnp.sum(row_loss, keepdims=True)               # (1, 1)

        acc_p[...] += head_sum(pvam_ref)
        acc_g[...] += head_sum(gsrm_ref)
        acc_v[...] += head_sum(vsfd_ref)
        acc_c[...] += jnp.sum(jnp.where(valid, 1.0, 0.0), keepdims=True)

    @pl.when(i == pl.num_programs(1) - 1)
    def _():
        # One (1, 4) write per split; the tiny lane-concat happens once here,
        # not on every grid step.
        out_ref[...] = jnp.concatenate(
            [acc_p[...], acc_g[...], acc_v[...], acc_c[...]], axis=1)


def srn_ce_means(pvam, gsrm, vsfd, targets, *, ignore_index=IGNORE_INDEX,
                 max_tile_rows=4096, num_splits=None):
    """Mean CE (ignore_index semantics) for the three SRN heads, fused.

    pvam/gsrm/vsfd: (N, C) logits (f32 or bf16); targets: (N,) ints.
    Returns (mean_pvam, mean_gsrm, mean_vsfd) as float32 scalars.
    """
    n, c = pvam.shape
    assert gsrm.shape == (n, c) and vsfd.shape == (n, c)

    # Sublane packing: bf16 packs 16 rows per vreg, f32 packs 8.
    sub = 16 if pvam.dtype == jnp.bfloat16 else 8

    splits = _default_num_splits() if num_splits is None else max(1, int(num_splits))

    # One row tile per split when it fits under the VMEM cap; otherwise the
    # largest VMEM-safe tile (minimizes per-grid-step pipeline overhead).
    tm = _round_up(pl.cdiv(n, splits), sub)
    tm = max(sub, min(tm, _round_up(max_tile_rows, sub)))

    total_tiles = pl.cdiv(n, tm)
    splits = max(1, min(splits, total_tiles))
    tiles_per_split = pl.cdiv(total_tiles, splits)
    last_block = total_tiles - 1

    tgt2d = targets.reshape(n, 1).astype(jnp.int32)

    # Clamp the block index so a fully out-of-range tail block (possible when
    # total_tiles does not divide evenly across splits) simply re-reads the
    # last in-range block; its compute is skipped in-kernel.
    def row_block(p, i):
        return (jnp.minimum(p * tiles_per_split + i, last_block), 0)

    kernel = functools.partial(
        _srn_ce_kernel, ignore_index=ignore_index, n_rows=n, tile_rows=tm,
        tiles_per_split=tiles_per_split, last_block=last_block)

    out = pl.pallas_call(
        kernel,
        out_shape=jax.ShapeDtypeStruct((splits, 4), jnp.float32),
        grid_spec=pltpu.PrefetchScalarGridSpec(
            num_scalar_prefetch=0,
            grid=(splits, tiles_per_split),
            in_specs=[
                pl.BlockSpec((tm, c), row_block),   # pvam logits
                pl.BlockSpec((tm, c), row_block),   # gsrm logits
                pl.BlockSpec((tm, c), row_block),   # vsfd logits
                pl.BlockSpec((tm, 1), row_block),   # targets
            ],
            out_specs=pl.BlockSpec((1, 4), lambda p, i: (p, 0)),
            scratch_shapes=[pltpu.VMEM((1, 1), jnp.float32)] * 4,
        ),
        # Outer split axis is independent (own output row + own accumulator
        # lifetime) -> shardable across the two TensorCores on v7x; on 1-TC
        # chips num_splits defaults to 1 so this axis is trivial.
        # (pltpu.CORE_PARALLEL on axis 0 is a candidate on v7x if plain
        #  "parallel" does not actually core-shard; keep "parallel" here for
        #  portability across generations.)
        compiler_params=pltpu.CompilerParams(
            dimension_semantics=("parallel", "arbitrary"),
            # Lane-padded (tm, 128) buffers x 4 inputs x 2 pipeline buffers at
            # tm=4096 is ~17 MiB plus in-kernel intermediates; raise the scoped
            # limit explicitly so v5e's 16 MiB default is not the bound while
            # staying well under v7x's 64 MiB physical VMEM.
            vmem_limit_bytes=48 * 1024 * 1024),
    )(pvam, gsrm, vsfd, tgt2d)

    sums = jnp.sum(out, axis=0)   # (4,) = [sum_pvam, sum_gsrm, sum_vsfd, count]
    cnt = sums[3]                 # NaN if every target == ignore_index (matches torch)
    return sums[0] / cnt, sums[1] / cnt, sums[2] / cnt


def srn_loss(predicts, target_label, *, ignore_index=IGNORE_INDEX,
             max_tile_rows=4096, num_splits=None):
    """JAX/Pallas equivalent of SRNLoss.forward."""
    vsfd_pred = predicts["predict"]
    pvam_pred = predicts["pvam_out"]
    gsrm_pred = predicts["gsrm_out"]

    def flat(x):
        return x.reshape(-1, x.shape[-1])

    tgt_flat = target_label.reshape(-1)

    cost_pvam, cost_gsrm, cost_vsfd = srn_ce_means(
        flat(pvam_pred), flat(gsrm_pred), flat(vsfd_pred), tgt_flat,
        ignore_index=ignore_index, max_tile_rows=max_tile_rows,
        num_splits=num_splits)

    sum_cost = cost_pvam * 3.0 + cost_vsfd + cost_gsrm * 0.5
    return {"loss": sum_cost, "pvam_loss": cost_pvam, "vsfd_loss": cost_vsfd}


if __name__ == "__main__":
    # Small synthetic shapes: batch=2, seq=25, num_classes=38 (ignore_index=37).
    B, T, C = 2, 25, 38
    key = jax.random.PRNGKey(0)
    k1, k2, k3, k4 = jax.random.split(key, 4)

    predicts = {
        "predict": jax.random.normal(k1, (B, T, C), jnp.float32),
        "pvam_out": jax.random.normal(k2, (B, T, C), jnp.float32),
        "gsrm_out": jax.random.normal(k3, (B, T, C), jnp.float32),
    }
    # targets include some ignore_index (=37) entries
    target_label = jax.random.randint(k4, (B, T), 0, C, jnp.int32)

    # 1) default config: whole N=50 row range in a single tile / single step.
    out = srn_loss(predicts, target_label)
    jax.block_until_ready(out)

    # 2) tiny tiles + 2 splits: exercises multi-tile accumulation, the parallel
    #    split axis, and in-kernel tail masking (N=50 vs tile=16).
    out_tiled = srn_loss(predicts, target_label, max_tile_rows=16, num_splits=2)
    jax.block_until_ready(out_tiled)

    # 3) odd tile count across 2 splits: exercises the clamped duplicate tail
    #    block whose compute is gated off in-kernel (3 tiles over 2 splits).
    out_clamp = srn_loss(predicts, target_label, max_tile_rows=24, num_splits=2)
    jax.block_until_ready(out_clamp)

    # Pure-JAX reference check
    def ref_ce(logits, tgt):
        logits = logits.reshape(-1, logits.shape[-1]).astype(jnp.float32)
        tgt = tgt.reshape(-1)
        lse = jax.scipy.special.logsumexp(logits, axis=-1)
        tl = jnp.take_along_axis(logits, tgt[:, None], axis=-1)[:, 0]
        valid = tgt != IGNORE_INDEX
        return jnp.sum(jnp.where(valid, lse - tl, 0.0)) / jnp.sum(valid)

    r_pvam = ref_ce(predicts["pvam_out"], target_label)
    r_gsrm = ref_ce(predicts["gsrm_out"], target_label)
    r_vsfd = ref_ce(predicts["predict"], target_label)
    r_loss = r_pvam * 3.0 + r_vsfd + r_gsrm * 0.5

    for o in (out, out_tiled, out_clamp):
        assert jnp.allclose(o["pvam_loss"], r_pvam, atol=1e-5, rtol=1e-5)
        assert jnp.allclose(o["vsfd_loss"], r_vsfd, atol=1e-5, rtol=1e-5)
        assert jnp.allclose(o["loss"], r_loss, atol=1e-5, rtol=1e-5)

    print("KERNEL_OK")
</pallas_src>

<mosaic_0001>
module attributes {stable_mosaic.version = 11 : i64} {
  func.func @_srn_ce_kernel(%arg0: i32, %arg1: i32, %arg2: memref<56x38xf32, #tpu.memory_space<vmem>>, %arg3: memref<56x38xf32, #tpu.memory_space<vmem>>, %arg4: memref<56x38xf32, #tpu.memory_space<vmem>>, %arg5: memref<56x1xi32, #tpu.memory_space<vmem>>, %arg6: memref<1x4xf32, #tpu.memory_space<vmem>>, %arg7: memref<1x1xf32, #tpu.memory_space<vmem>>, %arg8: memref<1x1xf32, #tpu.memory_space<vmem>>, %arg9: memref<1x1xf32, #tpu.memory_space<vmem>>, %arg10: memref<1x1xf32, #tpu.memory_space<vmem>>) attributes {dimension_semantics = [#tpu.dimension_semantics<parallel>, #tpu.dimension_semantics<arbitrary>], iteration_bounds = array<i64: 1, 1>, scalar_prefetch = 0 : i64, scratch_operands = 4 : i64, tpu.core_type = #tpu.core_type<tc>, window_params = [{transform_indices = @transform_0, window_bounds = array<i64: 56, 38>}, {transform_indices = @transform_1, window_bounds = array<i64: 56, 38>}, {transform_indices = @transform_2, window_bounds = array<i64: 56, 38>}, {transform_indices = @transform_3, window_bounds = array<i64: 56, 1>}, {transform_indices = @transform_4, window_bounds = array<i64: 1, 4>}]} {
    %c0_i32 = arith.constant 0 : i32
    %0 = arith.cmpi eq, %arg1, %c0_i32 : i32
    %1 = arith.extui %0 : i1 to i32
    %c0_i32_0 = arith.constant 0 : i32
    %2 = arith.cmpi ne, %1, %c0_i32_0 : i32
    scf.if %2 {
      %cst = arith.constant 0.000000e+00 : f32
      %11 = vector.broadcast %cst : f32 to vector<1x1xf32>
      %c0 = arith.constant 0 : index
      %c0_5 = arith.constant 0 : index
      %12 = vector.load %arg7[%c0, %c0_5] : memref<1x1xf32, #tpu.memory_space<vmem>>, vector<1x1xf32>
      tpu.vector_store %arg7[%c0, %c0_5], %11 {strides = array<i32>} : memref<1x1xf32, #tpu.memory_space<vmem>>, vector<1x1xf32>,
      %cst_6 = arith.constant 0.000000e+00 : f32
      %13 = vector.broadcast %cst_6 : f32 to vector<1x1xf32>
      %c0_7 = arith.constant 0 : index
      %c0_8 = arith.constant 0 : index
      %14 = vector.load %arg8[%c0_7, %c0_8] : memref<1x1xf32, #tpu.memory_space<vmem>>, vector<1x1xf32>
      tpu.vector_store %arg8[%c0_7, %c0_8], %13 {strides = array<i32>} : memref<1x1xf32, #tpu.memory_space<vmem>>, vector<1x1xf32>,
      %cst_9 = arith.constant 0.000000e+00 : f32
      %15 = vector.broadcast %cst_9 : f32 to vector<1x1xf32>
      %c0_10 = arith.constant 0 : index
      %c0_11 = arith.constant 0 : index
      %16 = vector.load %arg9[%c0_10, %c0_11] : memref<1x1xf32, #tpu.memory_space<vmem>>, vector<1x1xf32>
      tpu.vector_store %arg9[%c0_10, %c0_11], %15 {strides = array<i32>} : memref<1x1xf32, #tpu.memory_space<vmem>>, vector<1x1xf32>,
      %cst_12 = arith.constant 0.000000e+00 : f32
      %17 = vector.broadcast %cst_12 : f32 to vector<1x1xf32>
      %c0_13 = arith.constant 0 : index
      %c0_14 = arith.constant 0 : index
      %18 = vector.load %arg10[%c0_13, %c0_14] : memref<1x1xf32, #tpu.memory_space<vmem>>, vector<1x1xf32>
      tpu.vector_store %arg10[%c0_13, %c0_14], %17 {strides = array<i32>} : memref<1x1xf32, #tpu.memory_space<vmem>>, vector<1x1xf32>,
    } else {
    }
    %c1_i32 = arith.constant 1 : i32
    %3 = arith.muli %arg0, %c1_i32 : i32
    %4 = arith.addi %3, %arg1 : i32
    %c0_i32_1 = arith.constant 0 : i32
    %5 = arith.cmpi sle, %4, %c0_i32_1 : i32
    %6 = arith.extui %5 : i1 to i32
    %c0_i32_2 = arith.constant 0 : i32
    %7 = arith.cmpi ne, %6, %c0_i32_2 : i32
    scf.if %7 {
      %c0 = arith.constant 0 : index
      %c0_5 = arith.constant 0 : index
      %11 = vector.load %arg5[%c0, %c0_5] : memref<56x1xi32, #tpu.memory_space<vmem>>, vector<56x1xi32>
      %c56_i32 = arith.constant 56 : i32
      %12 = arith.muli %4, %c56_i32 : i32
      %13 = tpu.iota {dimensions = array<i32: 0>} : vector<56x1xi32>
      %14 = vector.broadcast %12 : i32 to vector<56x1xi32>
      %15 = arith.addi %14, %13 : vector<56x1xi32>
      %c50_i32 = arith.constant 50 : i32
      %16 = vector.broadcast %c50_i32 : i32 to vector<56x1xi32>
      %17 = arith.cmpi slt, %15, %16 : vector<56x1xi32>
      %c37_i32 = arith.constant 37 : i32
      %18 = vector.broadcast %c37_i32 : i32 to vector<56x1xi32>
      %19 = arith.cmpi ne, %11, %18 : vector<56x1xi32>
      %20 = arith.andi %17, %19 : vector<56x1xi1>
      %21 = tpu.iota {dimensions = array<i32: 1>} : vector<56x38xi32>
      %22 = vector.broadcast %11 : vector<56x1xi32> to vector<56x38xi32>
      %23 = arith.cmpi eq, %21, %22 : vector<56x38xi32>
      %cst = arith.constant 1.000000e+00 : f32
      %24 = vector.broadcast %cst : f32 to vector<38x1xf32>
      %c0_6 = arith.constant 0 : index
      %c0_7 = arith.constant 0 : index
      %25 = vector.load %arg7[%c0_6, %c0_7] : memref<1x1xf32, #tpu.memory_space<vmem>>, vector<1x1xf32>
      %c0_8 = arith.constant 0 : index
      %c0_9 = arith.constant 0 : index
      %26 = vector.load %arg2[%c0_8, %c0_9] : memref<56x38xf32, #tpu.memory_space<vmem>>, vector<56x38xf32>
      %cst_10 = arith.constant dense<0xFF800000> : vector<56xf32>
      %27 = vector.multi_reduction <maximumf>, %26, %cst_10 [1] : vector<56x38xf32> to vector<56xf32>
      %28 = vector.shape_cast %27 : vector<56xf32> to vector<56x1xf32>
      %29 = vector.broadcast %28 : vector<56x1xf32> to vector<56x38xf32>
      %30 = arith.subf %26, %29 : vector<56x38xf32>
      %31 = math.exp %30 : vector<56x38xf32>
      %cst_11 = arith.constant dense<0.000000e+00> : vector<56x1xf32>
      %32 = tpu.matmul %31, %24, %cst_11 {dimension_numbers = #tpu.dot_dimension_numbers<[1], [0], [0], [1], [0, 0, 1, 1], [], []>} : vector<56x38xf32>, vector<38x1xf32>, vector<56x1xf32> -> vector<56x1xf32>
      %33 = math.log %32 : vector<56x1xf32>
      %34 = arith.addf %28, %33 : vector<56x1xf32>
      %cst_12 = arith.constant 0.000000e+00 : f32
      %35 = vector.broadcast %cst_12 : f32 to vector<56x38xf32>
      %36 = arith.select %23, %26, %35 : vector<56x38xi1>, vector<56x38xf32>
      %cst_13 = arith.constant dense<0.000000e+00> : vector<56x1xf32>
      %37 = tpu.matmul %36, %24, %cst_13 {dimension_numbers = #tpu.dot_dimension_numbers<[1], [0], [0], [1], [0, 0, 1, 1], [], []>} : vector<56x38xf32>, vector<38x1xf32>, vector<56x1xf32> -> vector<56x1xf32>
      %38 = arith.subf %34, %37 : vector<56x1xf32>
      %cst_14 = arith.constant 0.000000e+00 : f32
      %39 = vector.broadcast %cst_14 : f32 to vector<56x1xf32>
      %40 = arith.select %20, %38, %39 : vector<56x1xi1>, vector<56x1xf32>
      %41 = vector.shape_cast %40 : vector<56x1xf32> to vector<1x56x1xf32>
      %cst_15 = arith.constant dense<0.000000e+00> : vector<1xf32>
      %42 = vector.multi_reduction <add>, %41, %cst_15 [1, 2] : vector<1x56x1xf32> to vector<1xf32>
      %43 = vector.shape_cast %42 : vector<1xf32> to vector<1x1x1xf32>
      %44 = vector.extract %43[0, 0, 0] : f32 from vector<1x1x1xf32>
      %45 = vector.broadcast %44 : f32 to vector<1x1xf32>
      %46 = arith.addf %25, %45 : vector<1x1xf32>
      %c0_16 = arith.constant 0 : index
      %c0_17 = arith.constant 0 : index
      %47 = vector.load %arg7[%c0_16, %c0_17] : memref<1x1xf32, #tpu.memory_space<vmem>>, vector<1x1xf32>
      tpu.vector_store %arg7[%c0_16, %c0_17], %46 {strides = array<i32>} : memref<1x1xf32, #tpu.memory_space<vmem>>, vector<1x1xf32>,
      %c0_18 = arith.constant 0 : index
      %c0_19 = arith.constant 0 : index
      %48 = vector.load %arg8[%c0_18, %c0_19] : memref<1x1xf32, #tpu.memory_space<vmem>>, vector<1x1xf32>
      %c0_20 = arith.constant 0 : index
      %c0_21 = arith.constant 0 : index
      %49 = vector.load %arg3[%c0_20, %c0_21] : memref<56x38xf32, #tpu.memory_space<vmem>>, vector<56x38xf32>
      %cst_22 = arith.constant dense<0xFF800000> : vector<56xf32>
      %50 = vector.multi_reduction <maximumf>, %49, %cst_22 [1] : vector<56x38xf32> to vector<56xf32>
      %51 = vector.shape_cast %50 : vector<56xf32> to vector<56x1xf32>
      %52 = vector.broadcast %51 : vector<56x1xf32> to vector<56x38xf32>
      %53 = arith.subf %49, %52 : vector<56x38xf32>
      %54 = math.exp %53 : vector<56x38xf32>
      %cst_23 = arith.constant dense<0.000000e+00> : vector<56x1xf32>
      %55 = tpu.matmul %54, %24, %cst_23 {dimension_numbers = #tpu.dot_dimension_numbers<[1], [0], [0], [1], [0, 0, 1, 1], [], []>} : vector<56x38xf32>, vector<38x1xf32>, vector<56x1xf32> -> vector<56x1xf32>
      %56 = math.log %55 : vector<56x1xf32>
      %57 = arith.addf %51, %56 : vector<56x1xf32>
      %cst_24 = arith.constant 0.000000e+00 : f32
      %58 = vector.broadcast %cst_24 : f32 to vector<56x38xf32>
      %59 = arith.select %23, %49, %58 : vector<56x38xi1>, vector<56x38xf32>
      %cst_25 = arith.constant dense<0.000000e+00> : vector<56x1xf32>
      %60 = tpu.matmul %59, %24, %cst_25 {dimension_numbers = #tpu.dot_dimension_numbers<[1], [0], [0], [1], [0, 0, 1, 1], [], []>} : vector<56x38xf32>, vector<38x1xf32>, vector<56x1xf32> -> vector<56x1xf32>
      %61 = arith.subf %57, %60 : vector<56x1xf32>
      %cst_26 = arith.constant 0.000000e+00 : f32
      %62 = vector.broadcast %cst_26 : f32 to vector<56x1xf32>
      %63 = arith.select %20, %61, %62 : vector<56x1xi1>, vector<56x1xf32>
      %64 = vector.shape_cast %63 : vector<56x1xf32> to vector<1x56x1xf32>
      %cst_27 = arith.constant dense<0.000000e+00> : vector<1xf32>
      %65 = vector.multi_reduction <add>, %64, %cst_27 [1, 2] : vector<1x56x1xf32> to vector<1xf32>
      %66 = vector.shape_cast %65 : vector<1xf32> to vector<1x1x1xf32>
      %67 = vector.extract %66[0, 0, 0] : f32 from vector<1x1x1xf32>
      %68 = vector.broadcast %67 : f32 to vector<1x1xf32>
      %69 = arith.addf %48, %68 : vector<1x1xf32>
      %c0_28 = arith.constant 0 : index
      %c0_29 = arith.constant 0 : index
      %70 = vector.load %arg8[%c0_28, %c0_29] : memref<1x1xf32, #tpu.memory_space<vmem>>, vector<1x1xf32>
      tpu.vector_store %arg8[%c0_28, %c0_29], %69 {strides = array<i32>} : memref<1x1xf32, #tpu.memory_space<vmem>>, vector<1x1xf32>,
      %c0_30 = arith.constant 0 : index
      %c0_31 = arith.constant 0 : index
      %71 = vector.load %arg9[%c0_30, %c0_31] : memref<1x1xf32, #tpu.memory_space<vmem>>, vector<1x1xf32>
      %c0_32 = arith.constant 0 : index
      %c0_33 = arith.constant 0 : index
      %72 = vector.load %arg4[%c0_32, %c0_33] : memref<56x38xf32, #tpu.memory_space<vmem>>, vector<56x38xf32>
      %cst_34 = arith.constant dense<0xFF800000> : vector<56xf32>
      %73 = vector.multi_reduction <maximumf>, %72, %cst_34 [1] : vector<56x38xf32> to vector<56xf32>
      %74 = vector.shape_cast %73 : vector<56xf32> to vector<56x1xf32>
      %75 = vector.broadcast %74 : vector<56x1xf32> to vector<56x38xf32>
      %76 = arith.subf %72, %75 : vector<56x38xf32>
      %77 = math.exp %76 : vector<56x38xf32>
      %cst_35 = arith.constant dense<0.000000e+00> : vector<56x1xf32>
      %78 = tpu.matmul %77, %24, %cst_35 {dimension_numbers = #tpu.dot_dimension_numbers<[1], [0], [0], [1], [0, 0, 1, 1], [], []>} : vector<56x38xf32>, vector<38x1xf32>, vector<56x1xf32> -> vector<56x1xf32>
      %79 = math.log %78 : vector<56x1xf32>
      %80 = arith.addf %74, %79 : vector<56x1xf32>
      %cst_36 = arith.constant 0.000000e+00 : f32
      %81 = vector.broadcast %cst_36 : f32 to vector<56x38xf32>
      %82 = arith.select %23, %72, %81 : vector<56x38xi1>, vector<56x38xf32>
      %cst_37 = arith.constant dense<0.000000e+00> : vector<56x1xf32>
      %83 = tpu.matmul %82, %24, %cst_37 {dimension_numbers = #tpu.dot_dimension_numbers<[1], [0], [0], [1], [0, 0, 1, 1], [], []>} : vector<56x38xf32>, vector<38x1xf32>, vector<56x1xf32> -> vector<56x1xf32>
      %84 = arith.subf %80, %83 : vector<56x1xf32>
      %cst_38 = arith.constant 0.000000e+00 : f32
      %85 = vector.broadcast %cst_38 : f32 to vector<56x1xf32>
      %86 = arith.select %20, %84, %85 : vector<56x1xi1>, vector<56x1xf32>
      %87 = vector.shape_cast %86 : vector<56x1xf32> to vector<1x56x1xf32>
      %cst_39 = arith.constant dense<0.000000e+00> : vector<1xf32>
      %88 = vector.multi_reduction <add>, %87, %cst_39 [1, 2] : vector<1x56x1xf32> to vector<1xf32>
      %89 = vector.shape_cast %88 : vector<1xf32> to vector<1x1x1xf32>
      %90 = vector.extract %89[0, 0, 0] : f32 from vector<1x1x1xf32>
      %91 = vector.broadcast %90 : f32 to vector<1x1xf32>
      %92 = arith.addf %71, %91 : vector<1x1xf32>
      %c0_40 = arith.constant 0 : index
      %c0_41 = arith.constant 0 : index
      %93 = vector.load %arg9[%c0_40, %c0_41] : memref<1x1xf32, #tpu.memory_space<vmem>>, vector<1x1xf32>
      tpu.vector_store %arg9[%c0_40, %c0_41], %92 {strides = array<i32>} : memref<1x1xf32, #tpu.memory_space<vmem>>, vector<1x1xf32>,
      %c0_42 = arith.constant 0 : index
      %c0_43 = arith.constant 0 : index
      %94 = vector.load %arg10[%c0_42, %c0_43] : memref<1x1xf32, #tpu.memory_space<vmem>>, vector<1x1xf32>
      %cst_44 = arith.constant 1.000000e+00 : f32
      %cst_45 = arith.constant 0.000000e+00 : f32
      %95 = vector.broadcast %cst_44 : f32 to vector<56x1xf32>
      %96 = vector.broadcast %cst_45 : f32 to vector<56x1xf32>
      %97 = arith.select %20, %95, %96 : vector<56x1xi1>, vector<56x1xf32>
      %98 = vector.shape_cast %97 : vector<56x1xf32> to vector<1x56x1xf32>
      %cst_46 = arith.constant dense<0.000000e+00> : vector<1xf32>
      %99 = vector.multi_reduction <add>, %98, %cst_46 [1, 2] : vector<1x56x1xf32> to vector<1xf32>
      %100 = vector.shape_cast %99 : vector<1xf32> to vector<1x1x1xf32>
      %101 = vector.extract %100[0, 0, 0] : f32 from vector<1x1x1xf32>
      %102 = vector.broadcast %101 : f32 to vector<1x1xf32>
      %103 = arith.addf %94, %102 : vector<1x1xf32>
      %c0_47 = arith.constant 0 : index
      %c0_48 = arith.constant 0 : index
      %104 = vector.load %arg10[%c0_47, %c0_48] : memref<1x1xf32, #tpu.memory_space<vmem>>, vector<1x1xf32>
      tpu.vector_store %arg10[%c0_47, %c0_48], %103 {strides = array<i32>} : memref<1x1xf32, #tpu.memory_space<vmem>>, vector<1x1xf32>,
    } else {
    }
    %c0_i32_3 = arith.constant 0 : i32
    %8 = arith.cmpi eq, %arg1, %c0_i32_3 : i32
    %9 = arith.extui %8 : i1 to i32
    %c0_i32_4 = arith.constant 0 : i32
    %10 = arith.cmpi ne, %9, %c0_i32_4 : i32
    scf.if %10 {
      %c0 = arith.constant 0 : index
      %c0_5 = arith.constant 0 : index
      %11 = vector.load %arg7[%c0, %c0_5] : memref<1x1xf32, #tpu.memory_space<vmem>>, vector<1x1xf32>
      %c0_6 = arith.constant 0 : index
      %c0_7 = arith.constant 0 : index
      %12 = vector.load %arg8[%c0_6, %c0_7] : memref<1x1xf32, #tpu.memory_space<vmem>>, vector<1x1xf32>
      %c0_8 = arith.constant 0 : index
      %c0_9 = arith.constant 0 : index
      %13 = vector.load %arg9[%c0_8, %c0_9] : memref<1x1xf32, #tpu.memory_space<vmem>>, vector<1x1xf32>
      %c0_10 = arith.constant 0 : index
      %c0_11 = arith.constant 0 : index
      %14 = vector.load %arg10[%c0_10, %c0_11] : memref<1x1xf32, #tpu.memory_space<vmem>>, vector<1x1xf32>
      %15 = tpu.concatenate %11, %12, %13, %14 in 1 : vector<1x1xf32>, vector<1x1xf32>, vector<1x1xf32>, vector<1x1xf32> -> vector<1x4xf32>
      %c0_12 = arith.constant 0 : index
      %c0_13 = arith.constant 0 : index
      %16 = vector.load %arg6[%c0_12, %c0_13] : memref<1x4xf32, #tpu.memory_space<vmem>>, vector<1x4xf32>
      tpu.vector_store %arg6[%c0_12, %c0_13], %15 {strides = array<i32>} : memref<1x4xf32, #tpu.memory_space<vmem>>, vector<1x4xf32>,
    } else {
    }
    return
  }
  func.func @transform_0(%arg0: i32, %arg1: i32) -> (i32, i32) {
    %c1_i32 = arith.constant 1 : i32
    %0 = arith.muli %arg0, %c1_i32 : i32
    %1 = arith.addi %0, %arg1 : i32
    %c0_i32 = arith.constant 0 : i32
    %2 = arith.minsi %1, %c0_i32 : i32
    %c0_i32_0 = arith.constant 0 : i32
    %c0_i32_1 = arith.constant 0 : i32
    return %2, %c0_i32_0 : i32, i32
  }
  func.func @transform_1(%arg0: i32, %arg1: i32) -> (i32, i32) {
    %c1_i32 = arith.constant 1 : i32
    %0 = arith.muli %arg0, %c1_i32 : i32
    %1 = arith.addi %0, %arg1 : i32
    %c0_i32 = arith.constant 0 : i32
    %2 = arith.minsi %1, %c0_i32 : i32
    %c0_i32_0 = arith.constant 0 : i32
    %c0_i32_1 = arith.constant 0 : i32
    return %2, %c0_i32_0 : i32, i32
  }
  func.func @transform_2(%arg0: i32, %arg1: i32) -> (i32, i32) {
    %c1_i32 = arith.constant 1 : i32
    %0 = arith.muli %arg0, %c1_i32 : i32
    %1 = arith.addi %0, %arg1 : i32
    %c0_i32 = arith.constant 0 : i32
    %2 = arith.minsi %1, %c0_i32 : i32
    %c0_i32_0 = arith.constant 0 : i32
    %c0_i32_1 = arith.constant 0 : i32
    return %2, %c0_i32_0 : i32, i32
  }
  func.func @transform_3(%arg0: i32, %arg1: i32) -> (i32, i32) {
    %c1_i32 = arith.constant 1 : i32
    %0 = arith.muli %arg0, %c1_i32 : i32
    %1 = arith.addi %0, %arg1 : i32
    %c0_i32 = arith.constant 0 : i32
    %2 = arith.minsi %1, %c0_i32 : i32
    %c0_i32_0 = arith.constant 0 : i32
    %c0_i32_1 = arith.constant 0 : i32
    return %2, %c0_i32_0 : i32, i32
  }
  func.func @transform_4(%arg0: i32, %arg1: i32) -> (i32, i32) {
    %c0_i32 = arith.constant 0 : i32
    %c0_i32_0 = arith.constant 0 : i32
    return %arg0, %c0_i32 : i32, i32
  }
}

</mosaic_0001>

<llo_original>
// kernel: tpu_custom_call.1
$region0: #{tpu_custom_call.1}
  #allocation0 [shape = 'u32[]', space=smem, size = 0x4, offset = 0x4, fixed_abs, tag = 'smem constant byte address 0x4 - core index']
  #allocation1 [shape = 'u32[144,128]{1,0:T(1,128)}', space=vmem, size = 0x12000, scoped, tag = 'internal scratch']
  #allocation2 [shape = 'f32[1,1]{1,0:T(1,128)}', space=vmem, size = 0x200, scoped, tag = 'scratch operand']
  #allocation3 [shape = 'f32[1,1]{1,0:T(1,128)}', space=vmem, size = 0x200, scoped, tag = 'scratch operand']
  #allocation4 [shape = 'f32[1,1]{1,0:T(1,128)}', space=vmem, size = 0x200, scoped, tag = 'scratch operand']
  #allocation5 [shape = 'f32[1,1]{1,0:T(1,128)}', space=vmem, size = 0x200, scoped, tag = 'scratch operand']
  %s0 = inlined_call_operand.vmem [shape: f32[50,38], index: 0, kind: input, shape index: {}]
  %s1 = inlined_call_operand.vmem [shape: f32[50,38], index: 1, kind: input, shape index: {}]
  %s2 = inlined_call_operand.vmem [shape: f32[50,38], index: 2, kind: input, shape index: {}]
  %s3 = inlined_call_operand.vmem [shape: s32[50,1], index: 3, kind: input, shape index: {}]
  %s4 = inlined_call_operand.hbm [shape: f32[1,4], index: 4, kind: output, shape index: {}]
  %s5 = sld [smem:[#allocation0]]
  $region38: #{tpu_custom_call.1} parent=0
    _
  %s7 = ssub.s32 1, %s5
  %s8 = scalar_select 0, %s7, %s5
  $region1: #{tpu_custom_call.1} parent=0
    #allocation6 [shape = 'u8[512]{0}', space=vmem, size = 0x400, scoped, tag = 'output window, operand 0, single buffered']
    #allocation7 [shape = 's32[1]{0}', space=sflag, size = 0x4, scoped, tag = 'scoped memory for tpu_custom_call.1']
    %9 = vsyncpa [#allocation7], 0
    // Predicated region
    $region2: #{tpu_custom_call.1} parent=1 // pred_check
      _
    $region3: #{tpu_custom_call.1} parent=1 // pred_check_branch
      %11 = sbr.rel (0) target = $region5
    $region4: #{tpu_custom_call.1} parent=1 // pred_region
      %s12 = sadd.s32 0, 0
      %p13 = scmp.lt.s32.totalorder %s12, 0
      %s14 = scalar_select %p13, %s12, 0
      %s15 = smul.u32 7, %s14
      %p16 = scmp.lt.s32.totalorder %s15, 6
      %s17 = scalar_select %p16, %s15, 6
      %s18 = smul.addr %s17, 8
      %s19 = scalar_lea.vmem %s0, %s18
      %s20 = sadd.s32 0, 0
      %p21 = scmp.lt.s32.totalorder %s20, 0
      %s22 = scalar_select %p21, %s20, 0
      %s23 = smul.u32 7, %s22
    $region5: #{tpu_custom_call.1} parent=1 // pred_fallthru
      _
    // Predicated region
    $region6: #{tpu_custom_call.1} parent=1 // pred_check
      _
    $region7: #{tpu_custom_call.1} parent=1 // pred_check_branch
      %25 = sbr.rel (0) target = $region9
    $region8: #{tpu_custom_call.1} parent=1 // pred_region
      %s26 = sadd.s32 0, 0
      %p27 = scmp.lt.s32.totalorder %s26, 0
      %s28 = scalar_select %p27, %s26, 0
      %s29 = smul.u32 7, %s28
      %p30 = scmp.lt.s32.totalorder %s29, 6
      %s31 = scalar_select %p30, %s29, 6
      %s32 = smul.addr %s31, 8
      %s33 = scalar_lea.vmem %s1, %s32
      %s34 = sadd.s32 0, 0
      %p35 = scmp.lt.s32.totalorder %s34, 0
      %s36 = scalar_select %p35, %s34, 0
      %s37 = smul.u32 7, %s36
    $region9: #{tpu_custom_call.1} parent=1 // pred_fallthru
      _
    // Predicated region
    $region10: #{tpu_custom_call.1} parent=1 // pred_check
      _
    $region11: #{tpu_custom_call.1} parent=1 // pred_check_branch
      %39 = sbr.rel (0) target = $region13
    $region12: #{tpu_custom_call.1} parent=1 // pred_region
      %s40 = sadd.s32 0, 0
      %p41 = scmp.lt.s32.totalorder %s40, 0
      %s42 = scalar_select %p41, %s40, 0
      %s43 = smul.u32 7, %s42
      %p44 = scmp.lt.s32.totalorder %s43, 6
      %s45 = scalar_select %p44, %s43, 6
      %s46 = smul.addr %s45, 8
      %s47 = scalar_lea.vmem %s2, %s46
      %s48 = sadd.s32 0, 0
      %p49 = scmp.lt.s32.totalorder %s48, 0
      %s50 = scalar_select %p49, %s48, 0
      %s51 = smul.u32 7, %s50
    $region13: #{tpu_custom_call.1} parent=1 // pred_fallthru
      _
    // Predicated region
    $region14: #{tpu_custom_call.1} parent=1 // pred_check
      _
    $region15: #{tpu_custom_call.1} parent=1 // pred_check_branch
      %53 = sbr.rel (0) target = $region17
    $region16: #{tpu_custom_call.1} parent=1 // pred_region
      %s54 = sadd.s32 0, 0
      %p55 = scmp.lt.s32.totalorder %s54, 0
      %s56 = scalar_select %p55, %s54, 0
      %s57 = smul.u32 7, %s56
      %p58 = scmp.lt.s32.totalorder %s57, 6
      %s59 = scalar_select %p58, %s57, 6
      %s60 = smul.addr %s59, 8
      %s61 = scalar_lea.vmem %s3, %s60
      %s62 = sadd.s32 0, 0
      %p63 = scmp.lt.s32.totalorder %s62, 0
      %s64 = scalar_select %p63, %s62, 0
      %s65 = smul.u32 7, %s64
    $region17: #{tpu_custom_call.1} parent=1 // pred_fallthru
      _
    %s66 = sadd.s32 0, 0
    %p67 = scmp.lt.s32.totalorder %s66, 0
    %s68 = scalar_select %p67, %s66, 0
    %s69 = smul.u32 7, %s68
    %p70 = scmp.lt.s32.totalorder %s69, 6
    %s71 = scalar_select %p70, %s69, 6
    %s72 = smul.addr %s71, 8
    %s73 = scalar_lea.vmem %s0, %s72
    %s74 = sadd.s32 0, 0
    %p75 = scmp.lt.s32.totalorder %s74, 0
    %s76 = scalar_select %p75, %s74, 0
    %s77 = smul.u32 7, %s76
    %p78 = scmp.lt.s32.totalorder %s77, 6
    %s79 = scalar_select %p78, %s77, 6
    %s80 = smul.addr %s79, 8
    %s81 = scalar_lea.vmem %s1, %s80
    %s82 = sadd.s32 0, 0
    %p83 = scmp.lt.s32.totalorder %s82, 0
    %s84 = scalar_select %p83, %s82, 0
    %s85 = smul.u32 7, %s84
    %p86 = scmp.lt.s32.totalorder %s85, 6
    %s87 = scalar_select %p86, %s85, 6
    %s88 = smul.addr %s87, 8
    %s89 = scalar_lea.vmem %s2, %s88
    %s90 = sadd.s32 0, 0
    %p91 = scmp.lt.s32.totalorder %s90, 0
    %s92 = scalar_select %p91, %s90, 0
    %s93 = smul.u32 7, %s92
    %p94 = scmp.lt.s32.totalorder %s93, 6
    %s95 = scalar_select %p94, %s93, 6
    %s96 = smul.addr %s95, 8
    %s97 = scalar_lea.vmem %s3, %s96
    %s98 = sadd.s32 0, 0
    %p99 = scmp.lt.s32.totalorder %s98, 0
    %s100 = scalar_select %p99, %s98, 0
    %s101 = smul.u32 7, %s100
    %p102 = scmp.lt.s32.totalorder %s101, 6
    %s103 = scalar_select %p102, %s101, 6
    %s104 = smul.addr %s103, 8
    %s105 = scalar_lea.vmem %s0, %s104
    %s106 = sadd.s32 0, 0
    %p107 = scmp.lt.s32.totalorder %s106, 0
    %s108 = scalar_select %p107, %s106, 0
    %s109 = smul.u32 7, %s108
    %s110 = sadd.s32 0, 0
    %p111 = scmp.lt.s32.totalorder %s110, 0
    %s112 = scalar_select %p111, %s110, 0
    %s113 = smul.u32 7, %s112
    %p114 = scmp.lt.s32.totalorder %s113, 6
    %s115 = scalar_select %p114, %s113, 6
    %s116 = smul.addr %s115, 8
    %s117 = scalar_lea.vmem %s1, %s116
    %s118 = sadd.s32 0, 0
    %p119 = scmp.lt.s32.totalorder %s118, 0
    %s120 = scalar_select %p119, %s118, 0
    %s121 = smul.u32 7, %s120
    %s122 = sadd.s32 0, 0
    %p123 = scmp.lt.s32.totalorder %s122, 0
    %s124 = scalar_select %p123, %s122, 0
    %s125 = smul.u32 7, %s124
    %p126 = scmp.lt.s32.totalorder %s125, 6
    %s127 = scalar_select %p126, %s125, 6
    %s128 = smul.addr %s127, 8
    %s129 = scalar_lea.vmem %s2, %s128
    %s130 = sadd.s32 0, 0
    %p131 = scmp.lt.s32.totalorder %s130, 0
    %s132 = scalar_select %p131, %s130, 0
    %s133 = smul.u32 7, %s132
    %s134 = sadd.s32 0, 0
    %p135 = scmp.lt.s32.totalorder %s134, 0
    %s136 = scalar_select %p135, %s134, 0
    %s137 = smul.u32 7, %s136
    %p138 = scmp.lt.s32.totalorder %s137, 6
    %s139 = scalar_select %p138, %s137, 6
    %s140 = smul.addr %s139, 8
    %s141 = scalar_lea.vmem %s3, %s140
    %s142 = sadd.s32 0, 0
    %p143 = scmp.lt.s32.totalorder %s142, 0
    %s144 = scalar_select %p143, %s142, 0
    %s145 = smul.u32 7, %s144
    %p146 = scmp.eq.s32.totalorder 0, 0
    // Predicated region
    $region18: #{tpu_custom_call.1} parent=1 // pred_check
      %p147 = pneg %p146
    $region19: #{tpu_custom_call.1} parent=1 // pred_check_branch
      %149 = sbr.rel (%p147) target = $region21
    $region20: #{tpu_custom_call.1} parent=1 // pred_region
      %vm150 = vcmask 0
      %151 = vst.msk [vmem:[#allocation2] sm:$0x1] %vm150, 0.0
      %152 = vst.msk [vmem:[#allocation3] sm:$0x1] %vm150, 0.0
      %153 = vst.msk [vmem:[#allocation4] sm:$0x1] %vm150, 0.0
      %154 = vst.msk [vmem:[#allocation5] sm:$0x1] %vm150, 0.0
    $region21: #{tpu_custom_call.1} parent=1 // pred_fallthru
      _
    %s155 = sadd.s32 0, 0
    %p156 = scmp.le.s32.totalorder %s155, 0
    // Predicated region
    $region22: #{tpu_custom_call.1} parent=1 // pred_check
      %p157 = pneg %p156
    $region23: #{tpu_custom_call.1} parent=1 // pred_check_branch
      %159 = sbr.rel (%p157) target = $region25
    $region24: #{tpu_custom_call.1} parent=1 // pred_region
      %v160 = vld [vmem:[%s141] sm:$0xff]
      %v161 = vld [vmem:[%s141 + $0x8] sm:$0xff]
      %v162 = vld [vmem:[%s141 + $0x10] sm:$0xff]
      %v163 = vld [vmem:[%s141 + $0x18] sm:$0xff]
      %v164 = vld [vmem:[%s141 + $0x20] sm:$0xff]
      %v165 = vld [vmem:[%s141 + $0x28] sm:$0xff]
      %v166 = vld [vmem:[%s141 + $0x30] sm:$0xff]
      %s167 = smul.u32 %s155, 56
      %v168 = vlaneseq
      %v169 = vshrl.u32 %v168, 7
      %v170 = vadd.s32 %v169, 8
      %v171 = vadd.s32 %v169, 16
      %v172 = vadd.s32 %v169, 24
      %v173 = vadd.s32 %v169, 32
      %v174 = vadd.s32 %v169, 40
      %v175 = vadd.s32 %v169, 48
      %v176 = vstv %s167
      %v177 = vadd.s32 %v176, %v169
      %v178 = vadd.s32 %v176, %v170
      %v179 = vadd.s32 %v176, %v171
      %v180 = vadd.s32 %v176, %v172
      %v181 = vadd.s32 %v176, %v173
      %v182 = vadd.s32 %v176, %v174
      %v183 = vadd.s32 %v176, %v175
      %vm184 = vcmp.lt.s32.totalorder %v177, 50
      %vm185 = vcmp.lt.s32.totalorder %v178, 50
      %vm186 = vcmp.lt.s32.totalorder %v179, 50
      %vm187 = vcmp.lt.s32.totalorder %v180, 50
      %vm188 = vcmp.lt.s32.totalorder %v181, 50
      %vm189 = vcmp.lt.s32.totalorder %v182, 50
      %vm190 = vcmp.lt.s32.totalorder %v183, 50
      %vm191 = vcmp.ne.s32.totalorder %v160, 37
      %vm192 = vcmp.ne.s32.totalorder %v161, 37
      %vm193 = vcmp.ne.s32.totalorder %v162, 37
      %vm194 = vcmp.ne.s32.totalorder %v163, 37
      %vm195 = vcmp.ne.s32.totalorder %v164, 37
      %vm196 = vcmp.ne.s32.totalorder %v165, 37
      %vm197 = vcmp.ne.s32.totalorder %v166, 37
      %vm198 = vmand %vm184, %vm191
      %vm199 = vmand %vm185, %vm192
      %vm200 = vmand %vm186, %vm193
      %vm201 = vmand %vm187, %vm194
      %vm202 = vmand %vm188, %vm195
      %vm203 = vmand %vm189, %vm196
      %vm204 = vmand %vm190, %vm197
      %v205 = vlaneseq
      %v206 = vand.u32 %v205, 127
      %207 = vset.pattern.permute.xlu0 0
      %208 = vperm.xlu0 %207, %v160
      %v209 = vpop.permute.xlu0 %208
      %210 = vset.pattern.permute.xlu0 0
      %211 = vperm.xlu0 %210, %v161
      %v212 = vpop.permute.xlu0 %211
      %213 = vset.pattern.permute.xlu0 0
      %214 = vperm.xlu0 %213, %v162
      %v215 = vpop.permute.xlu0 %214
      %216 = vset.pattern.permute.xlu0 0
      %217 = vperm.xlu0 %216, %v163
      %v218 = vpop.permute.xlu0 %217
      %219 = vset.pattern.permute.xlu0 0
      %220 = vperm.xlu0 %219, %v164
      %v221 = vpop.permute.xlu0 %220
      %222 = vset.pattern.permute.xlu0 0
      %223 = vperm.xlu0 %222, %v165
      %v224 = vpop.permute.xlu0 %223
      %225 = vset.pattern.permute.xlu0 0
      %226 = vperm.xlu0 %225, %v166
      %v227 = vpop.permute.xlu0 %226
      %vm228 = vcmp.eq.s32.totalorder %v206, %v209
      %vm229 = vcmp.eq.s32.totalorder %v206, %v212
      %vm230 = vcmp.eq.s32.totalorder %v206, %v215
      %vm231 = vcmp.eq.s32.totalorder %v206, %v218
      %vm232 = vcmp.eq.s32.totalorder %v206, %v221
      %vm233 = vcmp.eq.s32.totalorder %v206, %v224
      %vm234 = vcmp.eq.s32.totalorder %v206, %v227
      %v235 = vld [vmem:[#allocation2] sm:$0x1]
      %v236 = vld [vmem:[%s105] sm:$0xff]
      %v237 = vld [vmem:[%s105 + $0x8] sm:$0xff]
      %v238 = vld [vmem:[%s105 + $0x10] sm:$0xff]
      %v239 = vld [vmem:[%s105 + $0x18] sm:$0xff]
      %v240 = vld [vmem:[%s105 + $0x20] sm:$0xff]
      %v241 = vld [vmem:[%s105 + $0x28] sm:$0xff]
      %v242 = vld [vmem:[%s105 + $0x30] sm:$0xff]
      %vm243 = vcmask 310272
      %v244 = vsel %vm243, %v236, -inf
      %245 = vmax.xlane.f32.xlu0 %v244
      %v246 = vpop.xlane.xlu0 %245
      %v247 = vsel %vm243, %v237, -inf
      %248 = vmax.xlane.f32.xlu0 %v247
      %v249 = vpop.xlane.xlu0 %248
      %v250 = vsel %vm243, %v238, -inf
      %251 = vmax.xlane.f32.xlu0 %v250
      %v252 = vpop.xlane.xlu0 %251
      %v253 = vsel %vm243, %v239, -inf
      %254 = vmax.xlane.f32.xlu0 %v253
      %v255 = vpop.xlane.xlu0 %254
      %v256 = vsel %vm243, %v240, -inf
      %257 = vmax.xlane.f32.xlu0 %v256
      %v258 = vpop.xlane.xlu0 %257
      %v259 = vsel %vm243, %v241, -inf
      %260 = vmax.xlane.f32.xlu0 %v259
      %v261 = vpop.xlane.xlu0 %260
      %v262 = vsel %vm243, %v242, -inf
      %263 = vmax.xlane.f32.xlu0 %v262
      %v264 = vpop.xlane.xlu0 %263
      %v265 = vsub.f32 %v236, %v246
      %v266 = vsub.f32 %v237, %v249
      %v267 = vsub.f32 %v238, %v252
      %v268 = vsub.f32 %v239, %v255
      %v269 = vsub.f32 %v240, %v258
      %v270 = vsub.f32 %v241, %v261
      %v271 = vsub.f32 %v242, %v264
      %v272 = vmul.f32 %v265, 1.442695
      %v273 = vpow.pop %v272
      %v274 = vmul.f32 %v266, 1.442695
      %v275 = vpow.pop %v274
      %v276 = vmul.f32 %v267, 1.442695
      %v277 = vpow.pop %v276
      %v278 = vmul.f32 %v268, 1.442695
      %v279 = vpow.pop %v278
      %v280 = vmul.f32 %v269, 1.442695
      %v281 = vpow.pop %v280
      %v282 = vmul.f32 %v270, 1.442695
      %v283 = vpow.pop %v282
      %v284 = vmul.f32 %v271, 1.442695
      %v285 = vpow.pop %v284
      %v287 = vsel %vm243, %v273, 0
      %v290 = vsel %vm243, %v275, 0
      %v293 = vsel %vm243, %v277, 0
      %v296 = vsel %vm243, %v279, 0
      %v299 = vsel %vm243, %v281, 0
      %v302 = vsel %vm243, %v283, 0
      %v305 = vsel %vm243, %v285, 0
      %vm307 = vcmask 1045504
      %v309 = vsel %vm307, 1.0, 0
      %311 = vmatprep.subr.mxu0 0.0
      %312 = vmatpush1.msra.mxu0 1.0
      %313 = vmatprep.subr.mxu0 0.0
      %314 = vmatpush1.msra.mxu0 1.0
      %315 = vmatprep.subr.mxu0 0.0
      %316 = vmatpush1.msra.mxu0 1.0
      %317 = vmatprep.subr.mxu0 0.0
      %318 = vmatpush1.msra.mxu0 1.0
      %319 = vmatprep.subr.mxu0 0.0
      %320 = vmatpush1.msra.mxu0 %v309
      %321 = vmatprep.subr.mxu0 0.0
      %322 = vmatpush1.msra.mxu0 0.0
      %323 = vmatprep.subr.mxu0 0.0
      %324 = vmatpush1.msra.mxu0 0.0
      %325 = vmatprep.subr.mxu0 0.0
      %326 = vmatpush1.msra.mxu0 0.0
      %327 = vmatprep.subr.mxu0 0.0
      %328 = vmatpush1.msra.mxu0 0.0
      %329 = vmatprep.subr.mxu0 0.0
      %330 = vmatpush1.msra.mxu0 0.0
      %331 = vmatprep.subr.mxu0 0.0
      %332 = vmatpush1.msra.mxu0 0.0
      %333 = vmatprep.subr.mxu0 0.0
      %334 = vmatpush1.msra.mxu0 0.0
      %335 = vmatprep.subr.mxu0 0.0
      %336 = vmatpush1.msra.mxu0 0.0
      %337 = vmatprep.subr.mxu0 0.0
      %338 = vmatpush1.msra.mxu0 0.0
      %339 = vmatprep.subr.mxu0 0.0
      %340 = vmatpush1.msra.mxu0 0.0
      %341 = vmatprep.subr.mxu0 0.0
      %342 = vmatpush1.msra.mxu0 0.0
      %343 = vmatprep.subr.mxu0 0.0
      %344 = vmatpush1.msra.mxu0 0.0
      %345 = vmatprep.subr.mxu0 0.0
      %346 = vmatpush1.msra.mxu0 0.0
      %347 = vmatprep.subr.mxu0 0.0
      %348 = vmatpush1.msra.mxu0 0.0
      %349 = vmatprep.subr.mxu0 0.0
      %350 = vmatpush1.msra.mxu0 0.0
      %351 = vmatprep.subr.mxu0 0.0
      %352 = vmatpush1.msra.mxu0 0.0
      %353 = vmatprep.subr.mxu0 0.0
      %354 = vmatpush1.msra.mxu0 0.0
      %355 = vmatprep.subr.mxu0 0.0
      %356 = vmatpush1.msra.mxu0 0.0
      %357 = vmatprep.subr.mxu0 0.0
      %358 = vmatpush1.msra.mxu0 0.0
      %359 = vmatprep.subr.mxu0 0.0
      %360 = vmatpush1.msra.mxu0 0.0
      %361 = vmatprep.subr.mxu0 0.0
      %362 = vmatpush1.msra.mxu0 0.0
      %363 = vmatprep.subr.mxu0 0.0
      %364 = vmatpush1.msra.mxu0 0.0
      %365 = vmatprep.subr.mxu0 0.0
      %366 = vmatpush1.msra.mxu0 0.0
      %367 = vmatprep.subr.mxu0 0.0
      %368 = vmatpush1.msra.mxu0 0.0
      %369 = vmatprep.subr.mxu0 0.0
      %370 = vmatpush1.msra.mxu0 0.0
      %371 = vmatprep.subr.mxu0 0.0
      %372 = vmatpush1.msra.mxu0 0.0
      %373 = vmatprep.subr.mxu0 0.0
      %374 = vmatpush1.msra.mxu0 0.0
      %375 = vmatprep.mubr.f32.mxu0 0.0
      %376 = vmatmul.mubr.f32.gmra.mrb[0].mxu0 %v287
      %v377 = vpop.f32.mrb[0].mxu0
      %v378 = vadd.f32 0.0, %v377
      %v379 = vpop.f32.mrb[0].mxu0
      %380 = vmatprep.mubr.f32.mxu0 0.0
      %381 = vmatmul.mubr.f32.gmra.mrb[0].mxu0 %v290
      %v382 = vpop.f32.mrb[0].mxu0
      %v383 = vadd.f32 0.0, %v382
      %v384 = vpop.f32.mrb[0].mxu0
      %385 = vmatprep.mubr.f32.mxu0 0.0
      %386 = vmatmul.mubr.f32.gmra.mrb[0].mxu0 %v293
      %v387 = vpop.f32.mrb[0].mxu0
      %v388 = vadd.f32 0.0, %v387
      %v389 = vpop.f32.mrb[0].mxu0
      %390 = vmatprep.mubr.f32.mxu0 0.0
      %391 = vmatmul.mubr.f32.gmra.mrb[0].mxu0 %v296
      %v392 = vpop.f32.mrb[0].mxu0
      %v393 = vadd.f32 0.0, %v392
      %v394 = vpop.f32.mrb[0].mxu0
      %395 = vmatprep.mubr.f32.mxu0 0.0
      %396 = vmatmul.mubr.f32.gmra.mrb[0].mxu0 %v299
      %v397 = vpop.f32.mrb[0].mxu0
      %v398 = vadd.f32 0.0, %v397
      %v399 = vpop.f32.mrb[0].mxu0
      %400 = vmatprep.mubr.f32.mxu0 0.0
      %401 = vmatmul.mubr.f32.gmra.mrb[0].mxu0 %v302
      %v402 = vpop.f32.mrb[0].mxu0
      %v403 = vadd.f32 0.0, %v402
      %v404 = vpop.f32.mrb[0].mxu0
      %405 = vmatprep.mubr.f32.mxu0 0.0
      %406 = vmatmul.mubr.f32.gmra.mrb[0].mxu0 %v305
      %v407 = vpop.f32.mrb[0].mxu0
      %v408 = vadd.f32 0.0, %v407
      %v409 = vpop.f32.mrb[0].mxu0
      %410 = vdwg.mxu0
      %v411 = vlog2.pop %v378
      %v412 = vmul.f32 %v411, 0.6931472
      %v413 = vlog2.pop %v383
      %v414 = vmul.f32 %v413, 0.6931472
      %v415 = vlog2.pop %v388
      %v416 = vmul.f32 %v415, 0.6931472
      %v417 = vlog2.pop %v393
      %v418 = vmul.f32 %v417, 0.6931472
      %v419 = vlog2.pop %v398
      %v420 = vmul.f32 %v419, 0.6931472
      %v421 = vlog2.pop %v403
      %v422 = vmul.f32 %v421, 0.6931472
      %v423 = vlog2.pop %v408
      %v424 = vmul.f32 %v423, 0.6931472
      %v425 = vadd.f32 %v246, %v412
      %v426 = vadd.f32 %v249, %v414
      %v427 = vadd.f32 %v252, %v416
      %v428 = vadd.f32 %v255, %v418
      %v429 = vadd.f32 %v258, %v420
      %v430 = vadd.f32 %v261, %v422
      %v431 = vadd.f32 %v264, %v424
      %v432 = vsel %vm228, %v236, 0.0
      %v433 = vsel %vm229, %v237, 0.0
      %v434 = vsel %vm230, %v238, 0.0
      %v435 = vsel %vm231, %v239, 0.0
      %v436 = vsel %vm232, %v240, 0.0
      %v437 = vsel %vm233, %v241, 0.0
      %v438 = vsel %vm234, %v242, 0.0
      %v440 = vsel %vm243, %v432, 0
      %v443 = vsel %vm243, %v433, 0
      %v446 = vsel %vm243, %v434, 0
      %v449 = vsel %vm243, %v435, 0
      %v452 = vsel %vm243, %v436, 0
      %v455 = vsel %vm243, %v437, 0
      %v458 = vsel %vm243, %v438, 0
      %460 = vmatprep.subr.mxu0 0.0
      %461 = vmatpush1.msra.mxu0 1.0
      %462 = vmatprep.subr.mxu0 0.0
      %463 = vmatpush1.msra.mxu0 1.0
      %464 = vmatprep.subr.mxu0 0.0
      %465 = vmatpush1.msra.mxu0 1.0
      %466 = vmatprep.subr.mxu0 0.0
      %467 = vmatpush1.msra.mxu0 1.0
      %468 = vmatprep.subr.mxu0 0.0
      %469 = vmatpush1.msra.mxu0 %v309
      %470 = vmatprep.subr.mxu0 0.0
      %471 = vmatpush1.msra.mxu0 0.0
      %472 = vmatprep.subr.mxu0 0.0
      %473 = vmatpush1.msra.mxu0 0.0
      %474 = vmatprep.subr.mxu0 0.0
      %475 = vmatpush1.msra.mxu0 0.0
      %476 = vmatprep.subr.mxu0 0.0
      %477 = vmatpush1.msra.mxu0 0.0
      %478 = vmatprep.subr.mxu0 0.0
      %479 = vmatpush1.msra.mxu0 0.0
      %480 = vmatprep.subr.mxu0 0.0
      %481 = vmatpush1.msra.mxu0 0.0
      %482 = vmatprep.subr.mxu0 0.0
      %483 = vmatpush1.msra.mxu0 0.0
      %484 = vmatprep.subr.mxu0 0.0
      %485 = vmatpush1.msra.mxu0 0.0
      %486 = vmatprep.subr.mxu0 0.0
      %487 = vmatpush1.msra.mxu0 0.0
      %488 = vmatprep.subr.mxu0 0.0
      %489 = vmatpush1.msra.mxu0 0.0
      %490 = vmatprep.subr.mxu0 0.0
      %491 = vmatpush1.msra.mxu0 0.0
      %492 = vmatprep.subr.mxu0 0.0
      %493 = vmatpush1.msra.mxu0 0.0
      %494 = vmatprep.subr.mxu0 0.0
      %495 = vmatpush1.msra.mxu0 0.0
      %496 = vmatprep.subr.mxu0 0.0
      %497 = vmatpush1.msra.mxu0 0.0
      %498 = vmatprep.subr.mxu0 0.0
      %499 = vmatpush1.msra.mxu0 0.0
      %500 = vmatprep.subr.mxu0 0.0
      %501 = vmatpush1.msra.mxu0 0.0
      %502 = vmatprep.subr.mxu0 0.0
      %503 = vmatpush1.msra.mxu0 0.0
      %504 = vmatprep.subr.mxu0 0.0
      %505 = vmatpush1.msra.mxu0 0.0
      %506 = vmatprep.subr.mxu0 0.0
      %507 = vmatpush1.msra.mxu0 0.0
      %508 = vmatprep.subr.mxu0 0.0
      %509 = vmatpush1.msra.mxu0 0.0
      %510 = vmatprep.subr.mxu0 0.0
      %511 = vmatpush1.msra.mxu0 0.0
      %512 = vmatprep.subr.mxu0 0.0
      %513 = vmatpush1.msra.mxu0 0.0
      %514 = vmatprep.subr.mxu0 0.0
      %515 = vmatpush1.msra.mxu0 0.0
      %516 = vmatprep.subr.mxu0 0.0
      %517 = vmatpush1.msra.mxu0 0.0
      %518 = vmatprep.subr.mxu0 0.0
      %519 = vmatpush1.msra.mxu0 0.0
      %520 = vmatprep.subr.mxu0 0.0
      %521 = vmatpush1.msra.mxu0 0.0
      %522 = vmatprep.subr.mxu0 0.0
      %523 = vmatpush1.msra.mxu0 0.0
      %524 = vmatprep.mubr.f32.mxu0 0.0
      %525 = vmatmul.mubr.f32.gmra.mrb[0].mxu0 %v440
      %v526 = vpop.f32.mrb[0].mxu0
      %v527 = vadd.f32 0.0, %v526
      %v528 = vpop.f32.mrb[0].mxu0
      %529 = vmatprep.mubr.f32.mxu0 0.0
      %530 = vmatmul.mubr.f32.gmra.mrb[0].mxu0 %v443
      %v531 = vpop.f32.mrb[0].mxu0
      %v532 = vadd.f32 0.0, %v531
      %v533 = vpop.f32.mrb[0].mxu0
      %534 = vmatprep.mubr.f32.mxu0 0.0
      %535 = vmatmul.mubr.f32.gmra.mrb[0].mxu0 %v446
      %v536 = vpop.f32.mrb[0].mxu0
      %v537 = vadd.f32 0.0, %v536
      %v538 = vpop.f32.mrb[0].mxu0
      %539 = vmatprep.mubr.f32.mxu0 0.0
      %540 = vmatmul.mubr.f32.gmra.mrb[0].mxu0 %v449
      %v541 = vpop.f32.mrb[0].mxu0
      %v542 = vadd.f32 0.0, %v541
      %v543 = vpop.f32.mrb[0].mxu0
      %544 = vmatprep.mubr.f32.mxu0 0.0
      %545 = vmatmul.mubr.f32.gmra.mrb[0].mxu0 %v452
      %v546 = vpop.f32.mrb[0].mxu0
      %v547 = vadd.f32 0.0, %v546
      %v548 = vpop.f32.mrb[0].mxu0
      %549 = vmatprep.mubr.f32.mxu0 0.0
      %550 = vmatmul.mubr.f32.gmra.mrb[0].mxu0 %v455
      %v551 = vpop.f32.mrb[0].mxu0
      %v552 = vadd.f32 0.0, %v551
      %v553 = vpop.f32.mrb[0].mxu0
      %554 = vmatprep.mubr.f32.mxu0 0.0
      %555 = vmatmul.mubr.f32.gmra.mrb[0].mxu0 %v458
      %v556 = vpop.f32.mrb[0].mxu0
      %v557 = vadd.f32 0.0, %v556
      %v558 = vpop.f32.mrb[0].mxu0
      %559 = vdwg.mxu0
      %v560 = vsub.f32 %v425, %v527
      %v561 = vsub.f32 %v426, %v532
      %v562 = vsub.f32 %v427, %v537
      %v563 = vsub.f32 %v428, %v542
      %v564 = vsub.f32 %v429, %v547
      %v565 = vsub.f32 %v430, %v552
      %v566 = vsub.f32 %v431, %v557
      %v567 = vsel %vm198, %v560, 0.0
      %v568 = vsel %vm199, %v561, 0.0
      %v569 = vsel %vm200, %v562, 0.0
      %v570 = vsel %vm201, %v563, 0.0
      %v571 = vsel %vm202, %v564, 0.0
      %v572 = vsel %vm203, %v565, 0.0
      %v573 = vsel %vm204, %v566, 0.0
      %vm574 = vcmask 7168
      %v575 = vsel %vm574, %v567, 0.0
      %v576 = vsel %vm574, %v568, 0.0
      %v577 = vadd.f32 %v575, %v576
      %v578 = vsel %vm574, %v569, 0.0
      %v579 = vadd.f32 %v577, %v578
      %v580 = vsel %vm574, %v570, 0.0
      %v581 = vadd.f32 %v579, %v580
      %v582 = vsel %vm574, %v571, 0.0
      %v583 = vadd.f32 %v581, %v582
      %v584 = vsel %vm574, %v572, 0.0
      %v585 = vadd.f32 %v583, %v584
      %v586 = vsel %vm574, %v573, 0.0
      %v587 = vadd.f32 %v585, %v586
      %588 = vadd.xlane.f32.xlu0 %v587
      %v589 = vpop.xlane.xlu0 %588
      %v590 = vrot.slane %v589, 4
      %v591 = vadd.f32 %v589, %v590
      %v592 = vrot.slane %v591, 2
      %v593 = vadd.f32 %v591, %v592
      %v594 = vrot.slane %v593, 1
      %v595 = vadd.f32 %v593, %v594
      %s596 = vtos %v595
      %v597 = vstv %s596
      %v598 = vadd.f32 %v235, %v597
      %vm599 = vcmask 0
      %600 = vst.msk [vmem:[#allocation2] sm:$0x1] %vm599, %v598
      %v601 = vld [vmem:[#allocation3] sm:$0x1]
      %v602 = vld [vmem:[%s117] sm:$0xff]
      %v603 = vld [vmem:[%s117 + $0x8] sm:$0xff]
      %v604 = vld [vmem:[%s117 + $0x10] sm:$0xff]
      %v605 = vld [vmem:[%s117 + $0x18] sm:$0xff]
      %v606 = vld [vmem:[%s117 + $0x20] sm:$0xff]
      %v607 = vld [vmem:[%s117 + $0x28] sm:$0xff]
      %v608 = vld [vmem:[%s117 + $0x30] sm:$0xff]
      %v609 = vsel %vm243, %v602, -inf
      %610 = vmax.xlane.f32.xlu0 %v609
      %v611 = vpop.xlane.xlu0 %610
      %v612 = vsel %vm243, %v603, -inf
      %613 = vmax.xlane.f32.xlu0 %v612
      %v614 = vpop.xlane.xlu0 %613
      %v615 = vsel %vm243, %v604, -inf
      %616 = vmax.xlane.f32.xlu0 %v615
      %v617 = vpop.xlane.xlu0 %616
      %v618 = vsel %vm243, %v605, -inf
      %619 = vmax.xlane.f32.xlu0 %v618
      %v620 = vpop.xlane.xlu0 %619
      %v621 = vsel %vm243, %v606, -inf
      %622 = vmax.xlane.f32.xlu0 %v621
      %v623 = vpop.xlane.xlu0 %622
      %v624 = vsel %vm243, %v607, -inf
      %625 = vmax.xlane.f32.xlu0 %v624
      %v626 = vpop.xlane.xlu0 %625
      %v627 = vsel %vm243, %v608, -inf
      %628 = vmax.xlane.f32.xlu0 %v627
      %v629 = vpop.xlane.xlu0 %628
      %v630 = vsub.f32 %v602, %v611
      %v631 = vsub.f32 %v603, %v614
      %v632 = vsub.f32 %v604, %v617
      %v633 = vsub.f32 %v605, %v620
      %v634 = vsub.f32 %v606, %v623
      %v635 = vsub.f32 %v607, %v626
      %v636 = vsub.f32 %v608, %v629
      %v637 = vmul.f32 %v630, 1.442695
      %v638 = vpow.pop %v637
      %v639 = vmul.f32 %v631, 1.442695
      %v640 = vpow.pop %v639
      %v641 = vmul.f32 %v632, 1.442695
      %v642 = vpow.pop %v641
      %v643 = vmul.f32 %v633, 1.442695
      %v644 = vpow.pop %v643
      %v645 = vmul.f32 %v634, 1.442695
      %v646 = vpow.pop %v645
      %v647 = vmul.f32 %v635, 1.442695
      %v648 = vpow.pop %v647
      %v649 = vmul.f32 %v636, 1.442695
      %v650 = vpow.pop %v649
      %v652 = vsel %vm243, %v638, 0
      %v655 = vsel %vm243, %v640, 0
      %v658 = vsel %vm243, %v642, 0
      %v661 = vsel %vm243, %v644, 0
      %v664 = vsel %vm243, %v646, 0
      %v667 = vsel %vm243, %v648, 0
      %v670 = vsel %vm243, %v650, 0
      %672 = vmatprep.subr.mxu0 0.0
      %673 = vmatpush1.msra.mxu0 1.0
      %674 = vmatprep.subr.mxu0 0.0
      %675 = vmatpush1.msra.mxu0 1.0
      %676 = vmatprep.subr.mxu0 0.0
      %677 = vmatpush1.msra.mxu0 1.0
      %678 = vmatprep.subr.mxu0 0.0
      %679 = vmatpush1.msra.mxu0 1.0
      %680 = vmatprep.subr.mxu0 0.0
      %681 = vmatpush1.msra.mxu0 %v309
      %682 = vmatprep.subr.mxu0 0.0
      %683 = vmatpush1.msra.mxu0 0.0
      %684 = vmatprep.subr.mxu0 0.0
      %685 = vmatpush1.msra.mxu0 0.0
      %686 = vmatprep.subr.mxu0 0.0
      %687 = vmatpush1.msra.mxu0 0.0
      %688 = vmatprep.subr.mxu0 0.0
      %689 = vmatpush1.msra.mxu0 0.0
      %690 = vmatprep.subr.mxu0 0.0
      %691 = vmatpush1.msra.mxu0 0.0
      %692 = vmatprep.subr.mxu0 0.0
      %693 = vmatpush1.msra.mxu0 0.0
      %694 = vmatprep.subr.mxu0 0.0
      %695 = vmatpush1.msra.mxu0 0.0
      %696 = vmatprep.subr.mxu0 0.0
      %697 = vmatpush1.msra.mxu0 0.0
      %698 = vmatprep.subr.mxu0 0.0
      %699 = vmatpush1.msra.mxu0 0.0
      %700 = vmatprep.subr.mxu0 0.0
      %701 = vmatpush1.msra.mxu0 0.0
      %702 = vmatprep.subr.mxu0 0.0
      %703 = vmatpush1.msra.mxu0 0.0
      %704 = vmatprep.subr.mxu0 0.0
      %705 = vmatpush1.msra.mxu0 0.0
      %706 = vmatprep.subr.mxu0 0.0
      %707 = vmatpush1.msra.mxu0 0.0
      %708 = vmatprep.subr.mxu0 0.0
      %709 = vmatpush1.msra.mxu0 0.0
      %710 = vmatprep.subr.mxu0 0.0
      %711 = vmatpush1.msra.mxu0 0.0
      %712 = vmatprep.subr.mxu0 0.0
      %713 = vmatpush1.msra.mxu0 0.0
      %714 = vmatprep.subr.mxu0 0.0
      %715 = vmatpush1.msra.mxu0 0.0
      %716 = vmatprep.subr.mxu0 0.0
      %717 = vmatpush1.msra.mxu0 0.0
      %718 = vmatprep.subr.mxu0 0.0
      %719 = vmatpush1.msra.mxu0 0.0
      %720 = vmatprep.subr.mxu0 0.0
      %721 = vmatpush1.msra.mxu0 0.0
      %722 = vmatprep.subr.mxu0 0.0
      %723 = vmatpush1.msra.mxu0 0.0
      %724 = vmatprep.subr.mxu0 0.0
      %725 = vmatpush1.msra.mxu0 0.0
      %726 = vmatprep.subr.mxu0 0.0
      %727 = vmatpush1.msra.mxu0 0.0
      %728 = vmatprep.subr.mxu0 0.0
      %729 = vmatpush1.msra.mxu0 0.0
      %730 = vmatprep.subr.mxu0 0.0
      %731 = vmatpush1.msra.mxu0 0.0
      %732 = vmatprep.subr.mxu0 0.0
      %733 = vmatpush1.msra.mxu0 0.0
      %734 = vmatprep.subr.mxu0 0.0
      %735 = vmatpush1.msra.mxu0 0.0
      %736 = vmatprep.mubr.f32.mxu0 0.0
      %737 = vmatmul.mubr.f32.gmra.mrb[0].mxu0 %v652
      %v738 = vpop.f32.mrb[0].mxu0
      %v739 = vadd.f32 0.0, %v738
      %v740 = vpop.f32.mrb[0].mxu0
      %741 = vmatprep.mubr.f32.mxu0 0.0
      %742 = vmatmul.mubr.f32.gmra.mrb[0].mxu0 %v655
      %v743 = vpop.f32.mrb[0].mxu0
      %v744 = vadd.f32 0.0, %v743
      %v745 = vpop.f32.mrb[0].mxu0
      %746 = vmatprep.mubr.f32.mxu0 0.0
      %747 = vmatmul.mubr.f32.gmra.mrb[0].mxu0 %v658
      %v748 = vpop.f32.mrb[0].mxu0
      %v749 = vadd.f32 0.0, %v748
      %v750 = vpop.f32.mrb[0].mxu0
      %751 = vmatprep.mubr.f32.mxu0 0.0
      %752 = vmatmul.mubr.f32.gmra.mrb[0].mxu0 %v661
      %v753 = vpop.f32.mrb[0].mxu0
      %v754 = vadd.f32 0.0, %v753
      %v755 = vpop.f32.mrb[0].mxu0
      %756 = vmatprep.mubr.f32.mxu0 0.0
      %757 = vmatmul.mubr.f32.gmra.mrb[0].mxu0 %v664
      %v758 = vpop.f32.mrb[0].mxu0
      %v759 = vadd.f32 0.0, %v758
      %v760 = vpop.f32.mrb[0].mxu0
      %761 = vmatprep.mubr.f32.mxu0 0.0
      %762 = vmatmul.mubr.f32.gmra.mrb[0].mxu0 %v667
      %v763 = vpop.f32.mrb[0].mxu0
      %v764 = vadd.f32 0.0, %v763
      %v765 = vpop.f32.mrb[0].mxu0
      %766 = vmatprep.mubr.f32.mxu0 0.0
      %767 = vmatmul.mubr.f32.gmra.mrb[0].mxu0 %v670
      %v768 = vpop.f32.mrb[0].mxu0
      %v769 = vadd.f32 0.0, %v768
      %v770 = vpop.f32.mrb[0].mxu0
      %771 = vdwg.mxu0
      %v772 = vlog2.pop %v739
      %v773 = vmul.f32 %v772, 0.6931472
      %v774 = vlog2.pop %v744
      %v775 = vmul.f32 %v774, 0.6931472
      %v776 = vlog2.pop %v749
      %v777 = vmul.f32 %v776, 0.6931472
      %v778 = vlog2.pop %v754
      %v779 = vmul.f32 %v778, 0.6931472
      %v780 = vlog2.pop %v759
      %v781 = vmul.f32 %v780, 0.6931472
      %v782 = vlog2.pop %v764
      %v783 = vmul.f32 %v782, 0.6931472
      %v784 = vlog2.pop %v769
      %v785 = vmul.f32 %v784, 0.6931472
      %v786 = vadd.f32 %v611, %v773
      %v787 = vadd.f32 %v614, %v775
      %v788 = vadd.f32 %v617, %v777
      %v789 = vadd.f32 %v620, %v779
      %v790 = vadd.f32 %v623, %v781
      %v791 = vadd.f32 %v626, %v783
      %v792 = vadd.f32 %v629, %v785
      %v793 = vsel %vm228, %v602, 0.0
      %v794 = vsel %vm229, %v603, 0.0
      %v795 = vsel %vm230, %v604, 0.0
      %v796 = vsel %vm231, %v605, 0.0
      %v797 = vsel %vm232, %v606, 0.0
      %v798 = vsel %vm233, %v607, 0.0
      %v799 = vsel %vm234, %v608, 0.0
      %v801 = vsel %vm243, %v793, 0
      %v804 = vsel %vm243, %v794, 0
      %v807 = vsel %vm243, %v795, 0
      %v810 = vsel %vm243, %v796, 0
      %v813 = vsel %vm243, %v797, 0
      %v816 = vsel %vm243, %v798, 0
      %v819 = vsel %vm243, %v799, 0
      %821 = vmatprep.subr.mxu0 0.0
      %822 = vmatpush1.msra.mxu0 1.0
      %823 = vmatprep.subr.mxu0 0.0
      %824 = vmatpush1.msra.mxu0 1.0
      %825 = vmatprep.subr.mxu0 0.0
      %826 = vmatpush1.msra.mxu0 1.0
      %827 = vmatprep.subr.mxu0 0.0
      %828 = vmatpush1.msra.mxu0 1.0
      %829 = vmatprep.subr.mxu0 0.0
      %830 = vmatpush1.msra.mxu0 %v309
      %831 = vmatprep.subr.mxu0 0.0
      %832 = vmatpush1.msra.mxu0 0.0
      %833 = vmatprep.subr.mxu0 0.0
      %834 = vmatpush1.msra.mxu0 0.0
      %835 = vmatprep.subr.mxu0 0.0
      %836 = vmatpush1.msra.mxu0 0.0
      %837 = vmatprep.subr.mxu0 0.0
      %838 = vmatpush1.msra.mxu0 0.0
      %839 = vmatprep.subr.mxu0 0.0
      %840 = vmatpush1.msra.mxu0 0.0
      %841 = vmatprep.subr.mxu0 0.0
      %842 = vmatpush1.msra.mxu0 0.0
      %843 = vmatprep.subr.mxu0 0.0
      %844 = vmatpush1.msra.mxu0 0.0
      %845 = vmatprep.subr.mxu0 0.0
      %846 = vmatpush1.msra.mxu0 0.0
      %847 = vmatprep.subr.mxu0 0.0
      %848 = vmatpush1.msra.mxu0 0.0
      %849 = vmatprep.subr.mxu0 0.0
      %850 = vmatpush1.msra.mxu0 0.0
      %851 = vmatprep.subr.mxu0 0.0
      %852 = vmatpush1.msra.mxu0 0.0
      %853 = vmatprep.subr.mxu0 0.0
      %854 = vmatpush1.msra.mxu0 0.0
      %855 = vmatprep.subr.mxu0 0.0
      %856 = vmatpush1.msra.mxu0 0.0
      %857 = vmatprep.subr.mxu0 0.0
      %858 = vmatpush1.msra.mxu0 0.0
      %859 = vmatprep.subr.mxu0 0.0
      %860 = vmatpush1.msra.mxu0 0.0
      %861 = vmatprep.subr.mxu0 0.0
      %862 = vmatpush1.msra.mxu0 0.0
      %863 = vmatprep.subr.mxu0 0.0
      %864 = vmatpush1.msra.mxu0 0.0
      %865 = vmatprep.subr.mxu0 0.0
      %866 = vmatpush1.msra.mxu0 0.0
      %867 = vmatprep.subr.mxu0 0.0
      %868 = vmatpush1.msra.mxu0 0.0
      %869 = vmatprep.subr.mxu0 0.0
      %870 = vmatpush1.msra.mxu0 0.0
      %871 = vmatprep.subr.mxu0 0.0
      %872 = vmatpush1.msra.mxu0 0.0
      %873 = vmatprep.subr.mxu0 0.0
      %874 = vmatpush1.msra.mxu0 0.0
      %875 = vmatprep.subr.mxu0 0.0
      %876 = vmatpush1.msra.mxu0 0.0
      %877 = vmatprep.subr.mxu0 0.0
      %878 = vmatpush1.msra.mxu0 0.0
      %879 = vmatprep.subr.mxu0 0.0
      %880 = vmatpush1.msra.mxu0 0.0
      %881 = vmatprep.subr.mxu0 0.0
      %882 = vmatpush1.msra.mxu0 0.0
      %883 = vmatprep.subr.mxu0 0.0
      %884 = vmatpush1.msra.mxu0 0.0
      %885 = vmatprep.mubr.f32.mxu0 0.0
      %886 = vmatmul.mubr.f32.gmra.mrb[0].mxu0 %v801
      %v887 = vpop.f32.mrb[0].mxu0
      %v888 = vadd.f32 0.0, %v887
      %v889 = vpop.f32.mrb[0].mxu0
      %890 = vmatprep.mubr.f32.mxu0 0.0
      %891 = vmatmul.mubr.f32.gmra.mrb[0].mxu0 %v804
      %v892 = vpop.f32.mrb[0].mxu0
      %v893 = vadd.f32 0.0, %v892
      %v894 = vpop.f32.mrb[0].mxu0
      %895 = vmatprep.mubr.f32.mxu0 0.0
      %896 = vmatmul.mubr.f32.gmra.mrb[0].mxu0 %v807
      %v897 = vpop.f32.mrb[0].mxu0
      %v898 = vadd.f32 0.0, %v897
      %v899 = vpop.f32.mrb[0].mxu0
      %900 = vmatprep.mubr.f32.mxu0 0.0
      %901 = vmatmul.mubr.f32.gmra.mrb[0].mxu0 %v810
      %v902 = vpop.f32.mrb[0].mxu0
      %v903 = vadd.f32 0.0, %v902
      %v904 = vpop.f32.mrb[0].mxu0
      %905 = vmatprep.mubr.f32.mxu0 0.0
      %906 = vmatmul.mubr.f32.gmra.mrb[0].mxu0 %v813
      %v907 = vpop.f32.mrb[0].mxu0
      %v908 = vadd.f32 0.0, %v907
      %v909 = vpop.f32.mrb[0].mxu0
      %910 = vmatprep.mubr.f32.mxu0 0.0
      %911 = vmatmul.mubr.f32.gmra.mrb[0].mxu0 %v816
      %v912 = vpop.f32.mrb[0].mxu0
      %v913 = vadd.f32 0.0, %v912
      %v914 = vpop.f32.mrb[0].mxu0
      %915 = vmatprep.mubr.f32.mxu0 0.0
      %916 = vmatmul.mubr.f32.gmra.mrb[0].mxu0 %v819
      %v917 = vpop.f32.mrb[0].mxu0
      %v918 = vadd.f32 0.0, %v917
      %v919 = vpop.f32.mrb[0].mxu0
      %920 = vdwg.mxu0
      %v921 = vsub.f32 %v786, %v888
      %v922 = vsub.f32 %v787, %v893
      %v923 = vsub.f32 %v788, %v898
      %v924 = vsub.f32 %v789, %v903
      %v925 = vsub.f32 %v790, %v908
      %v926 = vsub.f32 %v791, %v913
      %v927 = vsub.f32 %v792, %v918
      %v928 = vsel %vm198, %v921, 0.0
      %v929 = vsel %vm199, %v922, 0.0
      %v930 = vsel %vm200, %v923, 0.0
      %v931 = vsel %vm201, %v924, 0.0
      %v932 = vsel %vm202, %v925, 0.0
      %v933 = vsel %vm203, %v926, 0.0
      %v934 = vsel %vm204, %v927, 0.0
      %v935 = vsel %vm574, %v928, 0.0
      %v936 = vsel %vm574, %v929, 0.0
      %v937 = vadd.f32 %v935, %v936
      %v938 = vsel %vm574, %v930, 0.0
      %v939 = vadd.f32 %v937, %v938
      %v940 = vsel %vm574, %v931, 0.0
      %v941 = vadd.f32 %v939, %v940
      %v942 = vsel %vm574, %v932, 0.0
      %v943 = vadd.f32 %v941, %v942
      %v944 = vsel %vm574, %v933, 0.0
      %v945 = vadd.f32 %v943, %v944
      %v946 = vsel %vm574, %v934, 0.0
      %v947 = vadd.f32 %v945, %v946
      %948 = vadd.xlane.f32.xlu0 %v947
      %v949 = vpop.xlane.xlu0 %948
      %v950 = vrot.slane %v949, 4
      %v951 = vadd.f32 %v949, %v950
      %v952 = vrot.slane %v951, 2
      %v953 = vadd.f32 %v951, %v952
      %v954 = vrot.slane %v953, 1
      %v955 = vadd.f32 %v953, %v954
      %s956 = vtos %v955
      %v957 = vstv %s956
      %v958 = vadd.f32 %v601, %v957
      %959 = vst.msk [vmem:[#allocation3] sm:$0x1] %vm599, %v958
      %v960 = vld [vmem:[#allocation4] sm:$0x1]
      %v961 = vld [vmem:[%s129] sm:$0xff]
      %v962 = vld [vmem:[%s129 + $0x8] sm:$0xff]
      %v963 = vld [vmem:[%s129 + $0x10] sm:$0xff]
      %v964 = vld [vmem:[%s129 + $0x18] sm:$0xff]
      %v965 = vld [vmem:[%s129 + $0x20] sm:$0xff]
      %v966 = vld [vmem:[%s129 + $0x28] sm:$0xff]
      %v967 = vld [vmem:[%s129 + $0x30] sm:$0xff]
      %v968 = vsel %vm243, %v961, -inf
      %969 = vmax.xlane.f32.xlu0 %v968
      %v970 = vpop.xlane.xlu0 %969
      %v971 = vsel %vm243, %v962, -inf
      %972 = vmax.xlane.f32.xlu0 %v971
      %v973 = vpop.xlane.xlu0 %972
      %v974 = vsel %vm243, %v963, -inf
      %975 = vmax.xlane.f32.xlu0 %v974
      %v976 = vpop.xlane.xlu0 %975
      %v977 = vsel %vm243, %v964, -inf
      %978 = vmax.xlane.f32.xlu0 %v977
      %v979 = vpop.xlane.xlu0 %978
      %v980 = vsel %vm243, %v965, -inf
      %981 = vmax.xlane.f32.xlu0 %v980
      %v982 = vpop.xlane.xlu0 %981
      %v983 = vsel %vm243, %v966, -inf
      %984 = vmax.xlane.f32.xlu0 %v983
      %v985 = vpop.xlane.xlu0 %984
      %v986 = vsel %vm243, %v967, -inf
      %987 = vmax.xlane.f32.xlu0 %v986
      %v988 = vpop.xlane.xlu0 %987
      %v989 = vsub.f32 %v961, %v970
      %v990 = vsub.f32 %v962, %v973
      %v991 = vsub.f32 %v963, %v976
      %v992 = vsub.f32 %v964, %v979
      %v993 = vsub.f32 %v965, %v982
      %v994 = vsub.f32 %v966, %v985
      %v995 = vsub.f32 %v967, %v988
      %v996 = vmul.f32 %v989, 1.442695
      %v997 = vpow.pop %v996
      %v998 = vmul.f32 %v990, 1.442695
      %v999 = vpow.pop %v998
      %v1000 = vmul.f32 %v991, 1.442695
      %v1001 = vpow.pop %v1000
      %v1002 = vmul.f32 %v992, 1.442695
      %v1003 = vpow.pop %v1002
      %v1004 = vmul.f32 %v993, 1.442695
      %v1005 = vpow.pop %v1004
      %v1006 = vmul.f32 %v994, 1.442695
      %v1007 = vpow.pop %v1006
      %v1008 = vmul.f32 %v995, 1.442695
      %v1009 = vpow.pop %v1008
      %v1011 = vsel %vm243, %v997, 0
      %v1014 = vsel %vm243, %v999, 0
      %v1017 = vsel %vm243, %v1001, 0
      %v1020 = vsel %vm243, %v1003, 0
      %v1023 = vsel %vm243, %v1005, 0
      %v1026 = vsel %vm243, %v1007, 0
      %v1029 = vsel %vm243, %v1009, 0
      %1031 = vmatprep.subr.mxu0 0.0
      %1032 = vmatpush1.msra.mxu0 1.0
      %1033 = vmatprep.subr.mxu0 0.0
      %1034 = vmatpush1.msra.mxu0 1.0
      %1035 = vmatprep.subr.mxu0 0.0
      %1036 = vmatpush1.msra.mxu0 1.0
      %1037 = vmatprep.subr.mxu0 0.0
      %1038 = vmatpush1.msra.mxu0 1.0
      %1039 = vmatprep.subr.mxu0 0.0
      %1040 = vmatpush1.msra.mxu0 %v309
      %1041 = vmatprep.subr.mxu0 0.0
      %1042 = vmatpush1.msra.mxu0 0.0
      %1043 = vmatprep.subr.mxu0 0.0
      %1044 = vmatpush1.msra.mxu0 0.0
      %1045 = vmatprep.subr.mxu0 0.0
      %1046 = vmatpush1.msra.mxu0 0.0
      %1047 = vmatprep.subr.mxu0 0.0
      %1048 = vmatpush1.msra.mxu0 0.0
      %1049 = vmatprep.subr.mxu0 0.0
      %1050 = vmatpush1.msra.mxu0 0.0
      %1051 = vmatprep.subr.mxu0 0.0
      %1052 = vmatpush1.msra.mxu0 0.0
      %1053 = vmatprep.subr.mxu0 0.0
      %1054 = vmatpush1.msra.mxu0 0.0
      %1055 = vmatprep.subr.mxu0 0.0
      %1056 = vmatpush1.msra.mxu0 0.0
      %1057 = vmatprep.subr.mxu0 0.0
      %1058 = vmatpush1.msra.mxu0 0.0
      %1059 = vmatprep.subr.mxu0 0.0
      %1060 = vmatpush1.msra.mxu0 0.0
      %1061 = vmatprep.subr.mxu0 0.0
      %1062 = vmatpush1.msra.mxu0 0.0
      %1063 = vmatprep.subr.mxu0 0.0
      %1064 = vmatpush1.msra.mxu0 0.0
      %1065 = vmatprep.subr.mxu0 0.0
      %1066 = vmatpush1.msra.mxu0 0.0
      %1067 = vmatprep.subr.mxu0 0.0
      %1068 = vmatpush1.msra.mxu0 0.0
      %1069 = vmatprep.subr.mxu0 0.0
      %1070 = vmatpush1.msra.mxu0 0.0
      %1071 = vmatprep.subr.mxu0 0.0
      %1072 = vmatpush1.msra.mxu0 0.0
      %1073 = vmatprep.subr.mxu0 0.0
      %1074 = vmatpush1.msra.mxu0 0.0
      %1075 = vmatprep.subr.mxu0 0.0
      %1076 = vmatpush1.msra.mxu0 0.0
      %1077 = vmatprep.subr.mxu0 0.0
      %1078 = vmatpush1.msra.mxu0 0.0
      %1079 = vmatprep.subr.mxu0 0.0
      %1080 = vmatpush1.msra.mxu0 0.0
      %1081 = vmatprep.subr.mxu0 0.0
      %1082 = vmatpush1.msra.mxu0 0.0
      %1083 = vmatprep.subr.mxu0 0.0
      %1084 = vmatpush1.msra.mxu0 0.0
      %1085 = vmatprep.subr.mxu0 0.0
      %1086 = vmatpush1.msra.mxu0 0.0
      %1087 = vmatprep.subr.mxu0 0.0
      %1088 = vmatpush1.msra.mxu0 0.0
      %1089 = vmatprep.subr.mxu0 0.0
      %1090 = vmatpush1.msra.mxu0 0.0
      %1091 = vmatprep.subr.mxu0 0.0
      %1092 = vmatpush1.msra.mxu0 0.0
      %1093 = vmatprep.subr.mxu0 0.0
      %1094 = vmatpush1.msra.mxu0 0.0
      %1095 = vmatprep.mubr.f32.mxu0 0.0
      %1096 = vmatmul.mubr.f32.gmra.mrb[0].mxu0 %v1011
      %v1097 = vpop.f32.mrb[0].mxu0
      %v1098 = vadd.f32 0.0, %v1097
      %v1099 = vpop.f32.mrb[0].mxu0
      %1100 = vmatprep.mubr.f32.mxu0 0.0
      %1101 = vmatmul.mubr.f32.gmra.mrb[0].mxu0 %v1014
      %v1102 = vpop.f32.mrb[0].mxu0
      %v1103 = vadd.f32 0.0, %v1102
      %v1104 = vpop.f32.mrb[0].mxu0
      %1105 = vmatprep.mubr.f32.mxu0 0.0
      %1106 = vmatmul.mubr.f32.gmra.mrb[0].mxu0 %v1017
      %v1107 = vpop.f32.mrb[0].mxu0
      %v1108 = vadd.f32 0.0, %v1107
      %v1109 = vpop.f32.mrb[0].mxu0
      %1110 = vmatprep.mubr.f32.mxu0 0.0
      %1111 = vmatmul.mubr.f32.gmra.mrb[0].mxu0 %v1020
      %v1112 = vpop.f32.mrb[0].mxu0
      %v1113 = vadd.f32 0.0, %v1112
      %v1114 = vpop.f32.mrb[0].mxu0
      %1115 = vmatprep.mubr.f32.mxu0 0.0
      %1116 = vmatmul.mubr.f32.gmra.mrb[0].mxu0 %v1023
      %v1117 = vpop.f32.mrb[0].mxu0
      %v1118 = vadd.f32 0.0, %v1117
      %v1119 = vpop.f32.mrb[0].mxu0
      %1120 = vmatprep.mubr.f32.mxu0 0.0
      %1121 = vmatmul.mubr.f32.gmra.mrb[0].mxu0 %v1026
      %v1122 = vpop.f32.mrb[0].mxu0
      %v1123 = vadd.f32 0.0, %v1122
      %v1124 = vpop.f32.mrb[0].mxu0
      %1125 = vmatprep.mubr.f32.mxu0 0.0
      %1126 = vmatmul.mubr.f32.gmra.mrb[0].mxu0 %v1029
      %v1127 = vpop.f32.mrb[0].mxu0
      %v1128 = vadd.f32 0.0, %v1127
      %v1129 = vpop.f32.mrb[0].mxu0
      %1130 = vdwg.mxu0
      %v1131 = vlog2.pop %v1098
      %v1132 = vmul.f32 %v1131, 0.6931472
      %v1133 = vlog2.pop %v1103
      %v1134 = vmul.f32 %v1133, 0.6931472
      %v1135 = vlog2.pop %v1108
      %v1136 = vmul.f32 %v1135, 0.6931472
      %v1137 = vlog2.pop %v1113
      %v1138 = vmul.f32 %v1137, 0.6931472
      %v1139 = vlog2.pop %v1118
      %v1140 = vmul.f32 %v1139, 0.6931472
      %v1141 = vlog2.pop %v1123
      %v1142 = vmul.f32 %v1141, 0.6931472
      %v1143 = vlog2.pop %v1128
      %v1144 = vmul.f32 %v1143, 0.6931472
      %v1145 = vadd.f32 %v970, %v1132
      %v1146 = vadd.f32 %v973, %v1134
      %v1147 = vadd.f32 %v976, %v1136
      %v1148 = vadd.f32 %v979, %v1138
      %v1149 = vadd.f32 %v982, %v1140
      %v1150 = vadd.f32 %v985, %v1142
      %v1151 = vadd.f32 %v988, %v1144
      %v1152 = vsel %vm228, %v961, 0.0
      %v1153 = vsel %vm229, %v962, 0.0
      %v1154 = vsel %vm230, %v963, 0.0
      %v1155 = vsel %vm231, %v964, 0.0
      %v1156 = vsel %vm232, %v965, 0.0
      %v1157 = vsel %vm233, %v966, 0.0
      %v1158 = vsel %vm234, %v967, 0.0
      %v1160 = vsel %vm243, %v1152, 0
      %v1163 = vsel %vm243, %v1153, 0
      %v1166 = vsel %vm243, %v1154, 0
      %v1169 = vsel %vm243, %v1155, 0
      %v1172 = vsel %vm243, %v1156, 0
      %v1175 = vsel %vm243, %v1157, 0
      %v1178 = vsel %vm243, %v1158, 0
      %1180 = vmatprep.subr.mxu0 0.0
      %1181 = vmatpush1.msra.mxu0 1.0
      %1182 = vmatprep.subr.mxu0 0.0
      %1183 = vmatpush1.msra.mxu0 1.0
      %1184 = vmatprep.subr.mxu0 0.0
      %1185 = vmatpush1.msra.mxu0 1.0
      %1186 = vmatprep.subr.mxu0 0.0
      %1187 = vmatpush1.msra.mxu0 1.0
      %1188 = vmatprep.subr.mxu0 0.0
      %1189 = vmatpush1.msra.mxu0 %v309
      %1190 = vmatprep.subr.mxu0 0.0
      %1191 = vmatpush1.msra.mxu0 0.0
      %1192 = vmatprep.subr.mxu0 0.0
      %1193 = vmatpush1.msra.mxu0 0.0
      %1194 = vmatprep.subr.mxu0 0.0
      %1195 = vmatpush1.msra.mxu0 0.0
      %1196 = vmatprep.subr.mxu0 0.0
      %1197 = vmatpush1.msra.mxu0 0.0
      %1198 = vmatprep.subr.mxu0 0.0
      %1199 = vmatpush1.msra.mxu0 0.0
      %1200 = vmatprep.subr.mxu0 0.0
      %1201 = vmatpush1.msra.mxu0 0.0
      %1202 = vmatprep.subr.mxu0 0.0
      %1203 = vmatpush1.msra.mxu0 0.0
      %1204 = vmatprep.subr.mxu0 0.0
      %1205 = vmatpush1.msra.mxu0 0.0
      %1206 = vmatprep.subr.mxu0 0.0
      %1207 = vmatpush1.msra.mxu0 0.0
      %1208 = vmatprep.subr.mxu0 0.0
      %1209 = vmatpush1.msra.mxu0 0.0
      %1210 = vmatprep.subr.mxu0 0.0
      %1211 = vmatpush1.msra.mxu0 0.0
      %1212 = vmatprep.subr.mxu0 0.0
      %1213 = vmatpush1.msra.mxu0 0.0
      %1214 = vmatprep.subr.mxu0 0.0
      %1215 = vmatpush1.msra.mxu0 0.0
      %1216 = vmatprep.subr.mxu0 0.0
      %1217 = vmatpush1.msra.mxu0 0.0
      %1218 = vmatprep.subr.mxu0 0.0
      %1219 = vmatpush1.msra.mxu0 0.0
      %1220 = vmatprep.subr.mxu0 0.0
      %1221 = vmatpush1.msra.mxu0 0.0
      %1222 = vmatprep.subr.mxu0 0.0
      %1223 = vmatpush1.msra.mxu0 0.0
      %1224 = vmatprep.subr.mxu0 0.0
      %1225 = vmatpush1.msra.mxu0 0.0
      %1226 = vmatprep.subr.mxu0 0.0
      %1227 = vmatpush1.msra.mxu0 0.0
      %1228 = vmatprep.subr.mxu0 0.0
      %1229 = vmatpush1.msra.mxu0 0.0
      %1230 = vmatprep.subr.mxu0 0.0
      %1231 = vmatpush1.msra.mxu0 0.0
      %1232 = vmatprep.subr.mxu0 0.0
      %1233 = vmatpush1.msra.mxu0 0.0
      %1234 = vmatprep.subr.mxu0 0.0
      %1235 = vmatpush1.msra.mxu0 0.0
      %1236 = vmatprep.subr.mxu0 0.0
      %1237 = vmatpush1.msra.mxu0 0.0
      %1238 = vmatprep.subr.mxu0 0.0
      %1239 = vmatpush1.msra.mxu0 0.0
      %1240 = vmatprep.subr.mxu0 0.0
      %1241 = vmatpush1.msra.mxu0 0.0
      %1242 = vmatprep.subr.mxu0 0.0
      %1243 = vmatpush1.msra.mxu0 0.0
      %1244 = vmatprep.mubr.f32.mxu0 0.0
      %1245 = vmatmul.mubr.f32.gmra.mrb[0].mxu0 %v1160
      %v1246 = vpop.f32.mrb[0].mxu0
      %v1247 = vadd.f32 0.0, %v1246
      %v1248 = vpop.f32.mrb[0].mxu0
      %1249 = vmatprep.mubr.f32.mxu0 0.0
      %1250 = vmatmul.mubr.f32.gmra.mrb[0].mxu0 %v1163
      %v1251 = vpop.f32.mrb[0].mxu0
      %v1252 = vadd.f32 0.0, %v1251
      %v1253 = vpop.f32.mrb[0].mxu0
      %1254 = vmatprep.mubr.f32.mxu0 0.0
      %1255 = vmatmul.mubr.f32.gmra.mrb[0].mxu0 %v1166
      %v1256 = vpop.f32.mrb[0].mxu0
      %v1257 = vadd.f32 0.0, %v1256
      %v1258 = vpop.f32.mrb[0].mxu0
      %1259 = vmatprep.mubr.f32.mxu0 0.0
      %1260 = vmatmul.mubr.f32.gmra.mrb[0].mxu0 %v1169
      %v1261 = vpop.f32.mrb[0].mxu0
      %v1262 = vadd.f32 0.0, %v1261
      %v1263 = vpop.f32.mrb[0].mxu0
      %1264 = vmatprep.mubr.f32.mxu0 0.0
      %1265 = vmatmul.mubr.f32.gmra.mrb[0].mxu0 %v1172
      %v1266 = vpop.f32.mrb[0].mxu0
      %v1267 = vadd.f32 0.0, %v1266
      %v1268 = vpop.f32.mrb[0].mxu0
      %1269 = vmatprep.mubr.f32.mxu0 0.0
      %1270 = vmatmul.mubr.f32.gmra.mrb[0].mxu0 %v1175
      %v1271 = vpop.f32.mrb[0].mxu0
      %v1272 = vadd.f32 0.0, %v1271
      %v1273 = vpop.f32.mrb[0].mxu0
      %1274 = vmatprep.mubr.f32.mxu0 0.0
      %1275 = vmatmul.mubr.f32.gmra.mrb[0].mxu0 %v1178
      %v1276 = vpop.f32.mrb[0].mxu0
      %v1277 = vadd.f32 0.0, %v1276
      %v1278 = vpop.f32.mrb[0].mxu0
      %1279 = vdwg.mxu0
      %v1280 = vsub.f32 %v1145, %v1247
      %v1281 = vsub.f32 %v1146, %v1252
      %v1282 = vsub.f32 %v1147, %v1257
      %v1283 = vsub.f32 %v1148, %v1262
      %v1284 = vsub.f32 %v1149, %v1267
      %v1285 = vsub.f32 %v1150, %v1272
      %v1286 = vsub.f32 %v1151, %v1277
      %v1287 = vsel %vm198, %v1280, 0.0
      %v1288 = vsel %vm199, %v1281, 0.0
      %v1289 = vsel %vm200, %v1282, 0.0
      %v1290 = vsel %vm201, %v1283, 0.0
      %v1291 = vsel %vm202, %v1284, 0.0
      %v1292 = vsel %vm203, %v1285, 0.0
      %v1293 = vsel %vm204, %v1286, 0.0
      %v1294 = vsel %vm574, %v1287, 0.0
      %v1295 = vsel %vm574, %v1288, 0.0
      %v1296 = vadd.f32 %v1294, %v1295
      %v1297 = vsel %vm574, %v1289, 0.0
      %v1298 = vadd.f32 %v1296, %v1297
      %v1299 = vsel %vm574, %v1290, 0.0
      %v1300 = vadd.f32 %v1298, %v1299
      %v1301 = vsel %vm574, %v1291, 0.0
      %v1302 = vadd.f32 %v1300, %v1301
      %v1303 = vsel %vm574, %v1292, 0.0
      %v1304 = vadd.f32 %v1302, %v1303
      %v1305 = vsel %vm574, %v1293, 0.0
      %v1306 = vadd.f32 %v1304, %v1305
      %1307 = vadd.xlane.f32.xlu0 %v1306
      %v1308 = vpop.xlane.xlu0 %1307
      %v1309 = vrot.slane %v1308, 4
      %v1310 = vadd.f32 %v1308, %v1309
      %v1311 = vrot.slane %v1310, 2
      %v1312 = vadd.f32 %v1310, %v1311
      %v1313 = vrot.slane %v1312, 1
      %v1314 = vadd.f32 %v1312, %v1313
      %s1315 = vtos %v1314
      %v1316 = vstv %s1315
      %v1317 = vadd.f32 %v960, %v1316
      %1318 = vst.msk [vmem:[#allocation4] sm:$0x1] %vm599, %v1317
      %v1319 = vld [vmem:[#allocation5] sm:$0x1]
      %v1320 = vsel %vm198, 1.0, 0.0
      %v1321 = vsel %vm199, 1.0, 0.0
      %v1322 = vsel %vm200, 1.0, 0.0
      %v1323 = vsel %vm201, 1.0, 0.0
      %v1324 = vsel %vm202, 1.0, 0.0
      %v1325 = vsel %vm203, 1.0, 0.0
      %v1326 = vsel %vm204, 1.0, 0.0
      %v1327 = vsel %vm574, %v1320, 0.0
      %v1328 = vsel %vm574, %v1321, 0.0
      %v1329 = vadd.f32 %v1327, %v1328
      %v1330 = vsel %vm574, %v1322, 0.0
      %v1331 = vadd.f32 %v1329, %v1330
      %v1332 = vsel %vm574, %v1323, 0.0
      %v1333 = vadd.f32 %v1331, %v1332
      %v1334 = vsel %vm574, %v1324, 0.0
      %v1335 = vadd.f32 %v1333, %v1334
      %v1336 = vsel %vm574, %v1325, 0.0
      %v1337 = vadd.f32 %v1335, %v1336
      %v1338 = vsel %vm574, %v1326, 0.0
      %v1339 = vadd.f32 %v1337, %v1338
      %1340 = vadd.xlane.f32.xlu0 %v1339
      %v1341 = vpop.xlane.xlu0 %1340
      %v1342 = vrot.slane %v1341, 4
      %v1343 = vadd.f32 %v1341, %v1342
      %v1344 = vrot.slane %v1343, 2
      %v1345 = vadd.f32 %v1343, %v1344
      %v1346 = vrot.slane %v1345, 1
      %v1347 = vadd.f32 %v1345, %v1346
      %s1348 = vtos %v1347
      %v1349 = vstv %s1348
      %v1350 = vadd.f32 %v1319, %v1349
      %1351 = vst.msk [vmem:[#allocation5] sm:$0x1] %vm599, %v1350
    $region25: #{tpu_custom_call.1} parent=1 // pred_fallthru
      _
    // Predicated region
    $region26: #{tpu_custom_call.1} parent=1 // pred_check
      %p1352 = pneg %p146
    $region27: #{tpu_custom_call.1} parent=1 // pred_check_branch
      %1354 = sbr.rel (%p1352) target = $region29
    $region28: #{tpu_custom_call.1} parent=1 // pred_region
      %v1355 = vld [vmem:[#allocation2] sm:$0x1]
      %v1356 = vld [vmem:[#allocation3] sm:$0x1]
      %v1357 = vld [vmem:[#allocation4] sm:$0x1]
      %v1358 = vld [vmem:[#allocation5] sm:$0x1]
      %v1360 = vlaneseq
      %v1361 = vshrl.u32 %v1360, 7
      %v1362 = vsub.s32 0, %v1361
      %v1363 = vrot.slane %v1356, %v1362
      %1364 = vrot.lane.b32.xlu0 %v1363, 1
      %v1365 = vpop.permute.xlu0 %1364
      %v1368 = vlaneseq
      %v1369 = vshrl.u32 %v1368, 7
      %v1370 = vsub.s32 0, %v1369
      %v1371 = vrot.slane %v1357, %v1370
      %1372 = vrot.lane.b32.xlu0 %v1371, 2
      %v1373 = vpop.permute.xlu0 %1372
      %v1376 = vlaneseq
      %v1377 = vshrl.u32 %v1376, 7
      %v1378 = vsub.s32 0, %v1377
      %v1379 = vrot.slane %v1358, %v1378
      %1380 = vrot.lane.b32.xlu0 %v1379, 3
      %v1381 = vpop.permute.xlu0 %1380
      %vm1383 = vcmask 7168
      %v1384 = vsel %vm1383, %v1355, %v1365
      %vm1385 = vcmask 15360
      %v1386 = vsel %vm1385, %v1384, %v1373
      %vm1387 = vcmask 23552
      %v1388 = vsel %vm1387, %v1386, %v1381
      %vm1389 = vcmask 24576
      %1390 = vst.msk [vmem:[#allocation6] sm:$0x1] %vm1389, %v1388
    $region29: #{tpu_custom_call.1} parent=1 // pred_fallthru
      _
    // Predicated region
    $region30: #{tpu_custom_call.1} parent=1 // pred_check
      _
    $region31: #{tpu_custom_call.1} parent=1 // pred_check_branch
      %1392 = sbr.rel (0) target = $region33
    $region32: #{tpu_custom_call.1} parent=1 // pred_region
      %s1394 = ssub.s32 16, 16
      %1395 = vsyncadd [#allocation7], %s1394
      %s1397 = sshll.u32 [#allocation6], 4
      %s1398 = int_to_ptr.vmem [resolvable:$true] %s1397
      %1400 = dma.vmem_to_hbm [thread:$0]  %s1398, 16, %s4, [#allocation7]
    $region33: #{tpu_custom_call.1} parent=1 // pred_fallthru
      _
    // Predicated region
    $region34: #{tpu_custom_call.1} parent=1 // pred_check
      _
    $region35: #{tpu_custom_call.1} parent=1 // pred_check_branch
      %1402 = sbr.rel (0) target = $region37
    $region36: #{tpu_custom_call.1} parent=1 // pred_region
      %1403 = dma.done [#allocation7], 16
    $region37: #{tpu_custom_call.1} parent=1 // pred_fallthru
      _
    %1404 = vsyncpa [#allocation7], 1

</llo_original>
